<compile_context>
chip_gen: v7x
topology: tpu7x:2x2x1
jax: 0.10.0
libtpu: 0.0.40
codegen_flags: <defaults>
</compile_context>

<pallas_src>
import functools

import jax
import jax.numpy as jnp
from jax import lax
from jax.experimental import pallas as pl
from jax.experimental.pallas import tpu as pltpu


# ---------------------------------------------------------------------------
# Fused kernel: W_g + W_x + ReLU + psi-branch + sigmoid + gating multiply.
# ---------------------------------------------------------------------------
def atg_fused_kernel(g_ref, x_ref,
                     g_dw, g_mask, g_pw, g_pb,
                     x_dw, x_mask, x_pw, x_pb,
                     p_dw, p_mask, p_pw, p_pb,
                     out_ref, *, H, W):
    HW = H * W

    def depthwise(act, dw_ref, mask_ref, dil):
        # act: (C, HW) f32.  dw_ref: (C, 9) VMEM.  mask_ref: (9, HW) {0,1} f32.
        # out[c, y*W+x] = sum_{ky,kx} w[c, ky*3+kx] * act[c, (y+dy)*W+(x+dx)]
        # (zero padded).  One whole-slab lane roll per tap; the boundary mask
        # is folded into a per-tap weight plane: w_col (C,1) * mask_row (1,HW).
        acc = jnp.zeros_like(act)
        for ky in range(3):
            dy = (ky - 1) * dil
            for kx in range(3):
                dx = (kx - 1) * dil
                kk = ky * 3 + kx
                shift = (-(dy * W + dx)) % HW
                t = pltpu.roll(act, shift, axis=1) if shift else act
                wplane = dw_ref[:, kk:kk + 1] * mask_ref[kk:kk + 1, :]
                acc = acc + t * wplane
        return acc

    def pointwise(act, pw_ref, pb_ref):
        # Folded 1x1 conv + BN (+ depthwise bias): (Cout,Cin) @ (Cin,HW) on MXU.
        return jnp.dot(pw_ref[...], act,
                       preferred_element_type=jnp.float32) + pb_ref[...]

    g_slab = g_ref[0].astype(jnp.float32)          # (Fg, HW)
    x_slab = x_ref[0].astype(jnp.float32)          # (Fl, HW)

    g1 = pointwise(depthwise(g_slab, g_dw, g_mask, 4), g_pw, g_pb)    # W_g
    x1 = pointwise(depthwise(x_slab, x_dw, x_mask, 6), x_pw, x_pb)    # W_x
    psi = jnp.maximum(g1 + x1, 0.0)                                   # ReLU
    att = jax.nn.sigmoid(
        pointwise(depthwise(psi, p_dw, p_mask, 8), p_pw, p_pb))       # (1, HW)

    # Single broadcast gating multiply + one full-width store.
    out_ref[0] = (att * x_slab).astype(out_ref.dtype)


# ---------------------------------------------------------------------------
# Host-side helpers
# ---------------------------------------------------------------------------
def make_tap_masks(H, W, dil):
    """(9, H*W) {0,1} planes implementing the zero padding for each 3x3 tap."""
    y = jnp.arange(H)[:, None]
    x = jnp.arange(W)[None, :]
    planes = []
    for ky in range(3):
        dy = (ky - 1) * dil
        for kx in range(3):
            dx = (kx - 1) * dil
            m = ((y + dy >= 0) & (y + dy < H) &
                 (x + dx >= 0) & (x + dx < W))
            planes.append(m.astype(jnp.float32).reshape(H * W))
    return jnp.stack(planes, axis=0)


def atg_forward(g_nchw, x_nchw, folded):
    N, Fg, H, W = g_nchw.shape
    Fl = x_nchw.shape[1]
    HW = H * W

    # Free reshape: collapse the two contiguous trailing dims -> lane-dense.
    g = g_nchw.reshape(N, Fg, HW)
    x = x_nchw.reshape(N, Fl, HW)

    vmem = pl.BlockSpec(memory_space=pltpu.MemorySpace.VMEM)
    param_args = []
    for prefix, dil in (('g', 4), ('x', 6), ('p', 8)):
        param_args += [folded[prefix + '_dw'],        # (Cin, 9)
                       make_tap_masks(H, W, dil),     # (9, HW)
                       folded[prefix + '_pw'],        # (Cout, Cin)
                       folded[prefix + '_pb']]        # (Cout, 1)

    out = pl.pallas_call(
        functools.partial(atg_fused_kernel, H=H, W=W),
        out_shape=jax.ShapeDtypeStruct((N, Fl, HW), x_nchw.dtype),
        grid=(N,),
        in_specs=[pl.BlockSpec((1, Fg, HW), lambda n: (n, 0, 0)),
                  pl.BlockSpec((1, Fl, HW), lambda n: (n, 0, 0))]
                 + [vmem] * len(param_args),
        out_specs=pl.BlockSpec((1, Fl, HW), lambda n: (n, 0, 0)),
        compiler_params=pltpu.CompilerParams(
            dimension_semantics=("parallel",)),
    )(g, x, *param_args)
    return out.reshape(N, Fl, H, W)


# ---------------------------------------------------------------------------
# Parameter init (PyTorch-shaped, synthetic) + host-side BN folding
# ---------------------------------------------------------------------------
def init_params(key, F_g, F_l, F_int):
    keys = iter(jax.random.split(key, 64))

    def nrm(shape, s):
        return jax.random.normal(next(keys), shape, jnp.float32) * s

    def branch(prefix, C_in, C_out):
        return {
            prefix + '_dw_w': nrm((C_in, 9), 0.1),        # depthwise 3x3
            prefix + '_dw_b': nrm((C_in,), 0.1),
            prefix + '_pw_w': nrm((C_in, C_out), 0.1),    # pointwise 1x1
            prefix + '_pw_b': nrm((C_out,), 0.1),
            prefix + '_bn_g': 1.0 + nrm((C_out,), 0.05),
            prefix + '_bn_b': nrm((C_out,), 0.05),
            prefix + '_bn_m': nrm((C_out,), 0.05),
            prefix + '_bn_v': 1.0 + jnp.abs(nrm((C_out,), 0.05)),
        }

    params = {}
    params.update(branch('g', F_g, F_int))    # W_g
    params.update(branch('x', F_l, F_int))    # W_x
    params.update(branch('p', F_int, 1))      # psi
    return params


def fold_params(params, eps=1e-5):
    """Fold depthwise bias + pointwise bias + BatchNorm into pw weights/bias.

    Pointwise weight is pre-transposed to (Cout, Cin) for the in-kernel MXU
    matmul; bias is (Cout, 1) so it broadcasts over the (Cout, HW) result.
    """
    folded = {}
    for prefix in ('g', 'x', 'p'):
        dw_w = params[prefix + '_dw_w']
        dw_b = params[prefix + '_dw_b']
        pw_w = params[prefix + '_pw_w']
        pw_b = params[prefix + '_pw_b']
        s = params[prefix + '_bn_g'] / jnp.sqrt(params[prefix + '_bn_v'] + eps)
        pw_w_f = (pw_w * s[None, :]).T                              # (Cout, Cin)
        bias_f = (dw_b @ pw_w + pw_b - params[prefix + '_bn_m']) * s \
            + params[prefix + '_bn_b']
        folded[prefix + '_dw'] = dw_w.astype(jnp.float32)           # (Cin, 9)
        folded[prefix + '_pw'] = pw_w_f.astype(jnp.float32)         # (Cout, Cin)
        folded[prefix + '_pb'] = bias_f.reshape(-1, 1).astype(jnp.float32)
    return folded


# ---------------------------------------------------------------------------
# Pure-JAX reference (unfolded params; inference-mode BN)
# ---------------------------------------------------------------------------
def atg_reference(g, x, params, eps=1e-5):
    def branch(inp, prefix, dil):
        C = inp.shape[1]
        dw = params[prefix + '_dw_w'].reshape(C, 3, 3)
        k = jnp.transpose(dw, (1, 2, 0))[:, :, None, :]   # (3,3,1,C) HWIO
        y = lax.conv_general_dilated(
            inp, k, window_strides=(1, 1),
            padding=[(dil, dil), (dil, dil)],
            rhs_dilation=(dil, dil),
            dimension_numbers=('NCHW', 'HWIO', 'NCHW'),
            feature_group_count=C)
        y = y + params[prefix + '_dw_b'][None, :, None, None]
        y = jnp.einsum('nchw,cd->ndhw', y, params[prefix + '_pw_w'])
        y = y + params[prefix + '_pw_b'][None, :, None, None]
        s = params[prefix + '_bn_g'] / jnp.sqrt(params[prefix + '_bn_v'] + eps)
        y = (y - params[prefix + '_bn_m'][None, :, None, None]) \
            * s[None, :, None, None] + params[prefix + '_bn_b'][None, :, None, None]
        return y

    g1 = branch(g, 'g', 4)
    x1 = branch(x, 'x', 6)
    psi = jnp.maximum(g1 + x1, 0.0)
    att = jax.nn.sigmoid(branch(psi, 'p', 8))
    return att * x


if __name__ == "__main__":
    key = jax.random.PRNGKey(0)
    kp, kg, kx = jax.random.split(key, 3)

    N, F_g, F_l, F_int, H, W = 2, 8, 8, 8, 16, 16
    raw = init_params(kp, F_g, F_l, F_int)
    folded = fold_params(raw)

    g = jax.random.normal(kg, (N, F_g, H, W), jnp.float32)   # NCHW (PyTorch)
    x = jax.random.normal(kx, (N, F_l, H, W), jnp.float32)   # NCHW (PyTorch)

    out = jax.block_until_ready(atg_forward(g, x, folded))
    ref = jax.block_until_ready(atg_reference(g, x, raw))

    assert out.shape == (N, F_l, H, W), out.shape
    max_err = float(jnp.max(jnp.abs(out - ref)))
    assert max_err < 5e-4, f"mismatch vs reference: max_err={max_err}"

    print("KERNEL_OK")
</pallas_src>

<mosaic_0001>
module attributes {stable_mosaic.version = 11 : i64} {
  func.func @atg_fused_kernel(%arg0: i32, %arg1: memref<1x8x256xf32, #tpu.memory_space<vmem>>, %arg2: memref<1x8x256xf32, #tpu.memory_space<vmem>>, %arg3: memref<8x9xf32, #tpu.memory_space<vmem>>, %arg4: memref<9x256xf32, #tpu.memory_space<vmem>>, %arg5: memref<8x8xf32, #tpu.memory_space<vmem>>, %arg6: memref<8x1xf32, #tpu.memory_space<vmem>>, %arg7: memref<8x9xf32, #tpu.memory_space<vmem>>, %arg8: memref<9x256xf32, #tpu.memory_space<vmem>>, %arg9: memref<8x8xf32, #tpu.memory_space<vmem>>, %arg10: memref<8x1xf32, #tpu.memory_space<vmem>>, %arg11: memref<8x9xf32, #tpu.memory_space<vmem>>, %arg12: memref<9x256xf32, #tpu.memory_space<vmem>>, %arg13: memref<1x8xf32, #tpu.memory_space<vmem>>, %arg14: memref<1x1xf32, #tpu.memory_space<vmem>>, %arg15: memref<1x8x256xf32, #tpu.memory_space<vmem>>) attributes {dimension_semantics = [#tpu.dimension_semantics<parallel>], iteration_bounds = array<i64: 2>, scalar_prefetch = 0 : i64, scratch_operands = 0 : i64, tpu.core_type = #tpu.core_type<tc>, window_params = [{transform_indices = @transform_0, window_bounds = array<i64: 1, 8, 256>}, {transform_indices = @transform_1, window_bounds = array<i64: 1, 8, 256>}, {pipeline_mode = #tpu.pipeline_mode<synchronous>, transform_indices = @transform_2, window_bounds = array<i64: 8, 9>}, {pipeline_mode = #tpu.pipeline_mode<synchronous>, transform_indices = @transform_3, window_bounds = array<i64: 9, 256>}, {pipeline_mode = #tpu.pipeline_mode<synchronous>, transform_indices = @transform_4, window_bounds = array<i64: 8, 8>}, {pipeline_mode = #tpu.pipeline_mode<synchronous>, transform_indices = @transform_5, window_bounds = array<i64: 8, 1>}, {pipeline_mode = #tpu.pipeline_mode<synchronous>, transform_indices = @transform_6, window_bounds = array<i64: 8, 9>}, {pipeline_mode = #tpu.pipeline_mode<synchronous>, transform_indices = @transform_7, window_bounds = array<i64: 9, 256>}, {pipeline_mode = #tpu.pipeline_mode<synchronous>, transform_indices = @transform_8, window_bounds = array<i64: 8, 8>}, {pipeline_mode = #tpu.pipeline_mode<synchronous>, transform_indices = @transform_9, window_bounds = array<i64: 8, 1>}, {pipeline_mode = #tpu.pipeline_mode<synchronous>, transform_indices = @transform_10, window_bounds = array<i64: 8, 9>}, {pipeline_mode = #tpu.pipeline_mode<synchronous>, transform_indices = @transform_11, window_bounds = array<i64: 9, 256>}, {pipeline_mode = #tpu.pipeline_mode<synchronous>, transform_indices = @transform_12, window_bounds = array<i64: 1, 8>}, {pipeline_mode = #tpu.pipeline_mode<synchronous>, transform_indices = @transform_13, window_bounds = array<i64: 1, 1>}, {transform_indices = @transform_14, window_bounds = array<i64: 1, 8, 256>}]} {
    %c0 = arith.constant 0 : index
    %c0_0 = arith.constant 0 : index
    %c0_1 = arith.constant 0 : index
    %0 = vector.load %arg1[%c0, %c0_0, %c0_1] : memref<1x8x256xf32, #tpu.memory_space<vmem>>, vector<1x8x256xf32>
    %1 = vector.shape_cast %0 : vector<1x8x256xf32> to vector<8x256xf32>
    %c0_2 = arith.constant 0 : index
    %c0_3 = arith.constant 0 : index
    %c0_4 = arith.constant 0 : index
    %2 = vector.load %arg2[%c0_2, %c0_3, %c0_4] : memref<1x8x256xf32, #tpu.memory_space<vmem>>, vector<1x8x256xf32>
    %3 = vector.shape_cast %2 : vector<1x8x256xf32> to vector<8x256xf32>
    %cst = arith.constant 0.000000e+00 : f32
    %4 = vector.broadcast %cst : f32 to vector<8x256xf32>
    %c68_i32 = arith.constant 68 : i32
    %5 = tpu.dynamic_rotate %1 by %c68_i32 dim 1 : vector<8x256xf32>, i32 -> vector<8x256xf32>
    %c0_5 = arith.constant 0 : index
    %c0_6 = arith.constant 0 : index
    %6 = vector.load %arg3[%c0_5, %c0_6] : memref<8x9xf32, #tpu.memory_space<vmem>>, vector<8x1xf32>
    %c0_7 = arith.constant 0 : index
    %c0_8 = arith.constant 0 : index
    %7 = vector.load %arg4[%c0_7, %c0_8] : memref<9x256xf32, #tpu.memory_space<vmem>>, vector<1x256xf32>
    %8 = vector.broadcast %6 : vector<8x1xf32> to vector<8x256xf32>
    %9 = vector.broadcast %7 : vector<1x256xf32> to vector<8x256xf32>
    %10 = arith.mulf %8, %9 : vector<8x256xf32>
    %11 = arith.mulf %5, %10 : vector<8x256xf32>
    %12 = arith.addf %4, %11 : vector<8x256xf32>
    %c64_i32 = arith.constant 64 : i32
    %13 = tpu.dynamic_rotate %1 by %c64_i32 dim 1 : vector<8x256xf32>, i32 -> vector<8x256xf32>
    %c0_9 = arith.constant 0 : index
    %c1 = arith.constant 1 : index
    %14 = vector.load %arg3[%c0_9, %c1] : memref<8x9xf32, #tpu.memory_space<vmem>>, vector<8x1xf32>
    %c1_10 = arith.constant 1 : index
    %c0_11 = arith.constant 0 : index
    %15 = vector.load %arg4[%c1_10, %c0_11] : memref<9x256xf32, #tpu.memory_space<vmem>>, vector<1x256xf32>
    %16 = vector.broadcast %14 : vector<8x1xf32> to vector<8x256xf32>
    %17 = vector.broadcast %15 : vector<1x256xf32> to vector<8x256xf32>
    %18 = arith.mulf %16, %17 : vector<8x256xf32>
    %19 = arith.mulf %13, %18 : vector<8x256xf32>
    %20 = arith.addf %12, %19 : vector<8x256xf32>
    %c60_i32 = arith.constant 60 : i32
    %21 = tpu.dynamic_rotate %1 by %c60_i32 dim 1 : vector<8x256xf32>, i32 -> vector<8x256xf32>
    %c0_12 = arith.constant 0 : index
    %c2 = arith.constant 2 : index
    %22 = vector.load %arg3[%c0_12, %c2] : memref<8x9xf32, #tpu.memory_space<vmem>>, vector<8x1xf32>
    %c2_13 = arith.constant 2 : index
    %c0_14 = arith.constant 0 : index
    %23 = vector.load %arg4[%c2_13, %c0_14] : memref<9x256xf32, #tpu.memory_space<vmem>>, vector<1x256xf32>
    %24 = vector.broadcast %22 : vector<8x1xf32> to vector<8x256xf32>
    %25 = vector.broadcast %23 : vector<1x256xf32> to vector<8x256xf32>
    %26 = arith.mulf %24, %25 : vector<8x256xf32>
    %27 = arith.mulf %21, %26 : vector<8x256xf32>
    %28 = arith.addf %20, %27 : vector<8x256xf32>
    %c4_i32 = arith.constant 4 : i32
    %29 = tpu.dynamic_rotate %1 by %c4_i32 dim 1 : vector<8x256xf32>, i32 -> vector<8x256xf32>
    %c0_15 = arith.constant 0 : index
    %c3 = arith.constant 3 : index
    %30 = vector.load %arg3[%c0_15, %c3] : memref<8x9xf32, #tpu.memory_space<vmem>>, vector<8x1xf32>
    %c3_16 = arith.constant 3 : index
    %c0_17 = arith.constant 0 : index
    %31 = vector.load %arg4[%c3_16, %c0_17] : memref<9x256xf32, #tpu.memory_space<vmem>>, vector<1x256xf32>
    %32 = vector.broadcast %30 : vector<8x1xf32> to vector<8x256xf32>
    %33 = vector.broadcast %31 : vector<1x256xf32> to vector<8x256xf32>
    %34 = arith.mulf %32, %33 : vector<8x256xf32>
    %35 = arith.mulf %29, %34 : vector<8x256xf32>
    %36 = arith.addf %28, %35 : vector<8x256xf32>
    %c0_18 = arith.constant 0 : index
    %c4 = arith.constant 4 : index
    %37 = vector.load %arg3[%c0_18, %c4] : memref<8x9xf32, #tpu.memory_space<vmem>>, vector<8x1xf32>
    %c4_19 = arith.constant 4 : index
    %c0_20 = arith.constant 0 : index
    %38 = vector.load %arg4[%c4_19, %c0_20] : memref<9x256xf32, #tpu.memory_space<vmem>>, vector<1x256xf32>
    %39 = vector.broadcast %37 : vector<8x1xf32> to vector<8x256xf32>
    %40 = vector.broadcast %38 : vector<1x256xf32> to vector<8x256xf32>
    %41 = arith.mulf %39, %40 : vector<8x256xf32>
    %42 = arith.mulf %1, %41 : vector<8x256xf32>
    %43 = arith.addf %36, %42 : vector<8x256xf32>
    %c252_i32 = arith.constant 252 : i32
    %44 = tpu.dynamic_rotate %1 by %c252_i32 dim 1 : vector<8x256xf32>, i32 -> vector<8x256xf32>
    %c0_21 = arith.constant 0 : index
    %c5 = arith.constant 5 : index
    %45 = vector.load %arg3[%c0_21, %c5] : memref<8x9xf32, #tpu.memory_space<vmem>>, vector<8x1xf32>
    %c5_22 = arith.constant 5 : index
    %c0_23 = arith.constant 0 : index
    %46 = vector.load %arg4[%c5_22, %c0_23] : memref<9x256xf32, #tpu.memory_space<vmem>>, vector<1x256xf32>
    %47 = vector.broadcast %45 : vector<8x1xf32> to vector<8x256xf32>
    %48 = vector.broadcast %46 : vector<1x256xf32> to vector<8x256xf32>
    %49 = arith.mulf %47, %48 : vector<8x256xf32>
    %50 = arith.mulf %44, %49 : vector<8x256xf32>
    %51 = arith.addf %43, %50 : vector<8x256xf32>
    %c196_i32 = arith.constant 196 : i32
    %52 = tpu.dynamic_rotate %1 by %c196_i32 dim 1 : vector<8x256xf32>, i32 -> vector<8x256xf32>
    %c0_24 = arith.constant 0 : index
    %c6 = arith.constant 6 : index
    %53 = vector.load %arg3[%c0_24, %c6] : memref<8x9xf32, #tpu.memory_space<vmem>>, vector<8x1xf32>
    %c6_25 = arith.constant 6 : index
    %c0_26 = arith.constant 0 : index
    %54 = vector.load %arg4[%c6_25, %c0_26] : memref<9x256xf32, #tpu.memory_space<vmem>>, vector<1x256xf32>
    %55 = vector.broadcast %53 : vector<8x1xf32> to vector<8x256xf32>
    %56 = vector.broadcast %54 : vector<1x256xf32> to vector<8x256xf32>
    %57 = arith.mulf %55, %56 : vector<8x256xf32>
    %58 = arith.mulf %52, %57 : vector<8x256xf32>
    %59 = arith.addf %51, %58 : vector<8x256xf32>
    %c192_i32 = arith.constant 192 : i32
    %60 = tpu.dynamic_rotate %1 by %c192_i32 dim 1 : vector<8x256xf32>, i32 -> vector<8x256xf32>
    %c0_27 = arith.constant 0 : index
    %c7 = arith.constant 7 : index
    %61 = vector.load %arg3[%c0_27, %c7] : memref<8x9xf32, #tpu.memory_space<vmem>>, vector<8x1xf32>
    %c7_28 = arith.constant 7 : index
    %c0_29 = arith.constant 0 : index
    %62 = vector.load %arg4[%c7_28, %c0_29] : memref<9x256xf32, #tpu.memory_space<vmem>>, vector<1x256xf32>
    %63 = vector.broadcast %61 : vector<8x1xf32> to vector<8x256xf32>
    %64 = vector.broadcast %62 : vector<1x256xf32> to vector<8x256xf32>
    %65 = arith.mulf %63, %64 : vector<8x256xf32>
    %66 = arith.mulf %60, %65 : vector<8x256xf32>
    %67 = arith.addf %59, %66 : vector<8x256xf32>
    %c188_i32 = arith.constant 188 : i32
    %68 = tpu.dynamic_rotate %1 by %c188_i32 dim 1 : vector<8x256xf32>, i32 -> vector<8x256xf32>
    %c0_30 = arith.constant 0 : index
    %c8 = arith.constant 8 : index
    %69 = vector.load %arg3[%c0_30, %c8] : memref<8x9xf32, #tpu.memory_space<vmem>>, vector<8x1xf32>
    %c8_31 = arith.constant 8 : index
    %c0_32 = arith.constant 0 : index
    %70 = vector.load %arg4[%c8_31, %c0_32] : memref<9x256xf32, #tpu.memory_space<vmem>>, vector<1x256xf32>
    %71 = vector.broadcast %69 : vector<8x1xf32> to vector<8x256xf32>
    %72 = vector.broadcast %70 : vector<1x256xf32> to vector<8x256xf32>
    %73 = arith.mulf %71, %72 : vector<8x256xf32>
    %74 = arith.mulf %68, %73 : vector<8x256xf32>
    %75 = arith.addf %67, %74 : vector<8x256xf32>
    %c0_33 = arith.constant 0 : index
    %c0_34 = arith.constant 0 : index
    %76 = vector.load %arg5[%c0_33, %c0_34] : memref<8x8xf32, #tpu.memory_space<vmem>>, vector<8x8xf32>
    %cst_35 = arith.constant dense<0.000000e+00> : vector<8x256xf32>
    %77 = tpu.matmul %76, %75, %cst_35 {dimension_numbers = #tpu.dot_dimension_numbers<[1], [0], [0], [1], [0, 0, 1, 1], [], []>} : vector<8x8xf32>, vector<8x256xf32>, vector<8x256xf32> -> vector<8x256xf32>
    %c0_36 = arith.constant 0 : index
    %c0_37 = arith.constant 0 : index
    %78 = vector.load %arg6[%c0_36, %c0_37] : memref<8x1xf32, #tpu.memory_space<vmem>>, vector<8x1xf32>
    %79 = vector.broadcast %78 : vector<8x1xf32> to vector<8x256xf32>
    %80 = arith.addf %77, %79 : vector<8x256xf32>
    %cst_38 = arith.constant 0.000000e+00 : f32
    %81 = vector.broadcast %cst_38 : f32 to vector<8x256xf32>
    %c102_i32 = arith.constant 102 : i32
    %82 = tpu.dynamic_rotate %3 by %c102_i32 dim 1 : vector<8x256xf32>, i32 -> vector<8x256xf32>
    %c0_39 = arith.constant 0 : index
    %c0_40 = arith.constant 0 : index
    %83 = vector.load %arg7[%c0_39, %c0_40] : memref<8x9xf32, #tpu.memory_space<vmem>>, vector<8x1xf32>
    %c0_41 = arith.constant 0 : index
    %c0_42 = arith.constant 0 : index
    %84 = vector.load %arg8[%c0_41, %c0_42] : memref<9x256xf32, #tpu.memory_space<vmem>>, vector<1x256xf32>
    %85 = vector.broadcast %83 : vector<8x1xf32> to vector<8x256xf32>
    %86 = vector.broadcast %84 : vector<1x256xf32> to vector<8x256xf32>
    %87 = arith.mulf %85, %86 : vector<8x256xf32>
    %88 = arith.mulf %82, %87 : vector<8x256xf32>
    %89 = arith.addf %81, %88 : vector<8x256xf32>
    %c96_i32 = arith.constant 96 : i32
    %90 = tpu.dynamic_rotate %3 by %c96_i32 dim 1 : vector<8x256xf32>, i32 -> vector<8x256xf32>
    %c0_43 = arith.constant 0 : index
    %c1_44 = arith.constant 1 : index
    %91 = vector.load %arg7[%c0_43, %c1_44] : memref<8x9xf32, #tpu.memory_space<vmem>>, vector<8x1xf32>
    %c1_45 = arith.constant 1 : index
    %c0_46 = arith.constant 0 : index
    %92 = vector.load %arg8[%c1_45, %c0_46] : memref<9x256xf32, #tpu.memory_space<vmem>>, vector<1x256xf32>
    %93 = vector.broadcast %91 : vector<8x1xf32> to vector<8x256xf32>
    %94 = vector.broadcast %92 : vector<1x256xf32> to vector<8x256xf32>
    %95 = arith.mulf %93, %94 : vector<8x256xf32>
    %96 = arith.mulf %90, %95 : vector<8x256xf32>
    %97 = arith.addf %89, %96 : vector<8x256xf32>
    %c90_i32 = arith.constant 90 : i32
    %98 = tpu.dynamic_rotate %3 by %c90_i32 dim 1 : vector<8x256xf32>, i32 -> vector<8x256xf32>
    %c0_47 = arith.constant 0 : index
    %c2_48 = arith.constant 2 : index
    %99 = vector.load %arg7[%c0_47, %c2_48] : memref<8x9xf32, #tpu.memory_space<vmem>>, vector<8x1xf32>
    %c2_49 = arith.constant 2 : index
    %c0_50 = arith.constant 0 : index
    %100 = vector.load %arg8[%c2_49, %c0_50] : memref<9x256xf32, #tpu.memory_space<vmem>>, vector<1x256xf32>
    %101 = vector.broadcast %99 : vector<8x1xf32> to vector<8x256xf32>
    %102 = vector.broadcast %100 : vector<1x256xf32> to vector<8x256xf32>
    %103 = arith.mulf %101, %102 : vector<8x256xf32>
    %104 = arith.mulf %98, %103 : vector<8x256xf32>
    %105 = arith.addf %97, %104 : vector<8x256xf32>
    %c6_i32 = arith.constant 6 : i32
    %106 = tpu.dynamic_rotate %3 by %c6_i32 dim 1 : vector<8x256xf32>, i32 -> vector<8x256xf32>
    %c0_51 = arith.constant 0 : index
    %c3_52 = arith.constant 3 : index
    %107 = vector.load %arg7[%c0_51, %c3_52] : memref<8x9xf32, #tpu.memory_space<vmem>>, vector<8x1xf32>
    %c3_53 = arith.constant 3 : index
    %c0_54 = arith.constant 0 : index
    %108 = vector.load %arg8[%c3_53, %c0_54] : memref<9x256xf32, #tpu.memory_space<vmem>>, vector<1x256xf32>
    %109 = vector.broadcast %107 : vector<8x1xf32> to vector<8x256xf32>
    %110 = vector.broadcast %108 : vector<1x256xf32> to vector<8x256xf32>
    %111 = arith.mulf %109, %110 : vector<8x256xf32>
    %112 = arith.mulf %106, %111 : vector<8x256xf32>
    %113 = arith.addf %105, %112 : vector<8x256xf32>
    %c0_55 = arith.constant 0 : index
    %c4_56 = arith.constant 4 : index
    %114 = vector.load %arg7[%c0_55, %c4_56] : memref<8x9xf32, #tpu.memory_space<vmem>>, vector<8x1xf32>
    %c4_57 = arith.constant 4 : index
    %c0_58 = arith.constant 0 : index
    %115 = vector.load %arg8[%c4_57, %c0_58] : memref<9x256xf32, #tpu.memory_space<vmem>>, vector<1x256xf32>
    %116 = vector.broadcast %114 : vector<8x1xf32> to vector<8x256xf32>
    %117 = vector.broadcast %115 : vector<1x256xf32> to vector<8x256xf32>
    %118 = arith.mulf %116, %117 : vector<8x256xf32>
    %119 = arith.mulf %3, %118 : vector<8x256xf32>
    %120 = arith.addf %113, %119 : vector<8x256xf32>
    %c250_i32 = arith.constant 250 : i32
    %121 = tpu.dynamic_rotate %3 by %c250_i32 dim 1 : vector<8x256xf32>, i32 -> vector<8x256xf32>
    %c0_59 = arith.constant 0 : index
    %c5_60 = arith.constant 5 : index
    %122 = vector.load %arg7[%c0_59, %c5_60] : memref<8x9xf32, #tpu.memory_space<vmem>>, vector<8x1xf32>
    %c5_61 = arith.constant 5 : index
    %c0_62 = arith.constant 0 : index
    %123 = vector.load %arg8[%c5_61, %c0_62] : memref<9x256xf32, #tpu.memory_space<vmem>>, vector<1x256xf32>
    %124 = vector.broadcast %122 : vector<8x1xf32> to vector<8x256xf32>
    %125 = vector.broadcast %123 : vector<1x256xf32> to vector<8x256xf32>
    %126 = arith.mulf %124, %125 : vector<8x256xf32>
    %127 = arith.mulf %121, %126 : vector<8x256xf32>
    %128 = arith.addf %120, %127 : vector<8x256xf32>
    %c166_i32 = arith.constant 166 : i32
    %129 = tpu.dynamic_rotate %3 by %c166_i32 dim 1 : vector<8x256xf32>, i32 -> vector<8x256xf32>
    %c0_63 = arith.constant 0 : index
    %c6_64 = arith.constant 6 : index
    %130 = vector.load %arg7[%c0_63, %c6_64] : memref<8x9xf32, #tpu.memory_space<vmem>>, vector<8x1xf32>
    %c6_65 = arith.constant 6 : index
    %c0_66 = arith.constant 0 : index
    %131 = vector.load %arg8[%c6_65, %c0_66] : memref<9x256xf32, #tpu.memory_space<vmem>>, vector<1x256xf32>
    %132 = vector.broadcast %130 : vector<8x1xf32> to vector<8x256xf32>
    %133 = vector.broadcast %131 : vector<1x256xf32> to vector<8x256xf32>
    %134 = arith.mulf %132, %133 : vector<8x256xf32>
    %135 = arith.mulf %129, %134 : vector<8x256xf32>
    %136 = arith.addf %128, %135 : vector<8x256xf32>
    %c160_i32 = arith.constant 160 : i32
    %137 = tpu.dynamic_rotate %3 by %c160_i32 dim 1 : vector<8x256xf32>, i32 -> vector<8x256xf32>
    %c0_67 = arith.constant 0 : index
    %c7_68 = arith.constant 7 : index
    %138 = vector.load %arg7[%c0_67, %c7_68] : memref<8x9xf32, #tpu.memory_space<vmem>>, vector<8x1xf32>
    %c7_69 = arith.constant 7 : index
    %c0_70 = arith.constant 0 : index
    %139 = vector.load %arg8[%c7_69, %c0_70] : memref<9x256xf32, #tpu.memory_space<vmem>>, vector<1x256xf32>
    %140 = vector.broadcast %138 : vector<8x1xf32> to vector<8x256xf32>
    %141 = vector.broadcast %139 : vector<1x256xf32> to vector<8x256xf32>
    %142 = arith.mulf %140, %141 : vector<8x256xf32>
    %143 = arith.mulf %137, %142 : vector<8x256xf32>
    %144 = arith.addf %136, %143 : vector<8x256xf32>
    %c154_i32 = arith.constant 154 : i32
    %145 = tpu.dynamic_rotate %3 by %c154_i32 dim 1 : vector<8x256xf32>, i32 -> vector<8x256xf32>
    %c0_71 = arith.constant 0 : index
    %c8_72 = arith.constant 8 : index
    %146 = vector.load %arg7[%c0_71, %c8_72] : memref<8x9xf32, #tpu.memory_space<vmem>>, vector<8x1xf32>
    %c8_73 = arith.constant 8 : index
    %c0_74 = arith.constant 0 : index
    %147 = vector.load %arg8[%c8_73, %c0_74] : memref<9x256xf32, #tpu.memory_space<vmem>>, vector<1x256xf32>
    %148 = vector.broadcast %146 : vector<8x1xf32> to vector<8x256xf32>
    %149 = vector.broadcast %147 : vector<1x256xf32> to vector<8x256xf32>
    %150 = arith.mulf %148, %149 : vector<8x256xf32>
    %151 = arith.mulf %145, %150 : vector<8x256xf32>
    %152 = arith.addf %144, %151 : vector<8x256xf32>
    %c0_75 = arith.constant 0 : index
    %c0_76 = arith.constant 0 : index
    %153 = vector.load %arg9[%c0_75, %c0_76] : memref<8x8xf32, #tpu.memory_space<vmem>>, vector<8x8xf32>
    %cst_77 = arith.constant dense<0.000000e+00> : vector<8x256xf32>
    %154 = tpu.matmul %153, %152, %cst_77 {dimension_numbers = #tpu.dot_dimension_numbers<[1], [0], [0], [1], [0, 0, 1, 1], [], []>} : vector<8x8xf32>, vector<8x256xf32>, vector<8x256xf32> -> vector<8x256xf32>
    %c0_78 = arith.constant 0 : index
    %c0_79 = arith.constant 0 : index
    %155 = vector.load %arg10[%c0_78, %c0_79] : memref<8x1xf32, #tpu.memory_space<vmem>>, vector<8x1xf32>
    %156 = vector.broadcast %155 : vector<8x1xf32> to vector<8x256xf32>
    %157 = arith.addf %154, %156 : vector<8x256xf32>
    %158 = arith.addf %80, %157 : vector<8x256xf32>
    %cst_80 = arith.constant 0.000000e+00 : f32
    %159 = vector.broadcast %cst_80 : f32 to vector<8x256xf32>
    %160 = arith.maximumf %158, %159 : vector<8x256xf32>
    %cst_81 = arith.constant 0.000000e+00 : f32
    %161 = vector.broadcast %cst_81 : f32 to vector<8x256xf32>
    %c136_i32 = arith.constant 136 : i32
    %162 = tpu.dynamic_rotate %160 by %c136_i32 dim 1 : vector<8x256xf32>, i32 -> vector<8x256xf32>
    %c0_82 = arith.constant 0 : index
    %c0_83 = arith.constant 0 : index
    %163 = vector.load %arg11[%c0_82, %c0_83] : memref<8x9xf32, #tpu.memory_space<vmem>>, vector<8x1xf32>
    %c0_84 = arith.constant 0 : index
    %c0_85 = arith.constant 0 : index
    %164 = vector.load %arg12[%c0_84, %c0_85] : memref<9x256xf32, #tpu.memory_space<vmem>>, vector<1x256xf32>
    %165 = vector.broadcast %163 : vector<8x1xf32> to vector<8x256xf32>
    %166 = vector.broadcast %164 : vector<1x256xf32> to vector<8x256xf32>
    %167 = arith.mulf %165, %166 : vector<8x256xf32>
    %168 = arith.mulf %162, %167 : vector<8x256xf32>
    %169 = arith.addf %161, %168 : vector<8x256xf32>
    %c128_i32 = arith.constant 128 : i32
    %170 = tpu.dynamic_rotate %160 by %c128_i32 dim 1 : vector<8x256xf32>, i32 -> vector<8x256xf32>
    %c0_86 = arith.constant 0 : index
    %c1_87 = arith.constant 1 : index
    %171 = vector.load %arg11[%c0_86, %c1_87] : memref<8x9xf32, #tpu.memory_space<vmem>>, vector<8x1xf32>
    %c1_88 = arith.constant 1 : index
    %c0_89 = arith.constant 0 : index
    %172 = vector.load %arg12[%c1_88, %c0_89] : memref<9x256xf32, #tpu.memory_space<vmem>>, vector<1x256xf32>
    %173 = vector.broadcast %171 : vector<8x1xf32> to vector<8x256xf32>
    %174 = vector.broadcast %172 : vector<1x256xf32> to vector<8x256xf32>
    %175 = arith.mulf %173, %174 : vector<8x256xf32>
    %176 = arith.mulf %170, %175 : vector<8x256xf32>
    %177 = arith.addf %169, %176 : vector<8x256xf32>
    %c120_i32 = arith.constant 120 : i32
    %178 = tpu.dynamic_rotate %160 by %c120_i32 dim 1 : vector<8x256xf32>, i32 -> vector<8x256xf32>
    %c0_90 = arith.constant 0 : index
    %c2_91 = arith.constant 2 : index
    %179 = vector.load %arg11[%c0_90, %c2_91] : memref<8x9xf32, #tpu.memory_space<vmem>>, vector<8x1xf32>
    %c2_92 = arith.constant 2 : index
    %c0_93 = arith.constant 0 : index
    %180 = vector.load %arg12[%c2_92, %c0_93] : memref<9x256xf32, #tpu.memory_space<vmem>>, vector<1x256xf32>
    %181 = vector.broadcast %179 : vector<8x1xf32> to vector<8x256xf32>
    %182 = vector.broadcast %180 : vector<1x256xf32> to vector<8x256xf32>
    %183 = arith.mulf %181, %182 : vector<8x256xf32>
    %184 = arith.mulf %178, %183 : vector<8x256xf32>
    %185 = arith.addf %177, %184 : vector<8x256xf32>
    %c8_i32 = arith.constant 8 : i32
    %186 = tpu.dynamic_rotate %160 by %c8_i32 dim 1 : vector<8x256xf32>, i32 -> vector<8x256xf32>
    %c0_94 = arith.constant 0 : index
    %c3_95 = arith.constant 3 : index
    %187 = vector.load %arg11[%c0_94, %c3_95] : memref<8x9xf32, #tpu.memory_space<vmem>>, vector<8x1xf32>
    %c3_96 = arith.constant 3 : index
    %c0_97 = arith.constant 0 : index
    %188 = vector.load %arg12[%c3_96, %c0_97] : memref<9x256xf32, #tpu.memory_space<vmem>>, vector<1x256xf32>
    %189 = vector.broadcast %187 : vector<8x1xf32> to vector<8x256xf32>
    %190 = vector.broadcast %188 : vector<1x256xf32> to vector<8x256xf32>
    %191 = arith.mulf %189, %190 : vector<8x256xf32>
    %192 = arith.mulf %186, %191 : vector<8x256xf32>
    %193 = arith.addf %185, %192 : vector<8x256xf32>
    %c0_98 = arith.constant 0 : index
    %c4_99 = arith.constant 4 : index
    %194 = vector.load %arg11[%c0_98, %c4_99] : memref<8x9xf32, #tpu.memory_space<vmem>>, vector<8x1xf32>
    %c4_100 = arith.constant 4 : index
    %c0_101 = arith.constant 0 : index
    %195 = vector.load %arg12[%c4_100, %c0_101] : memref<9x256xf32, #tpu.memory_space<vmem>>, vector<1x256xf32>
    %196 = vector.broadcast %194 : vector<8x1xf32> to vector<8x256xf32>
    %197 = vector.broadcast %195 : vector<1x256xf32> to vector<8x256xf32>
    %198 = arith.mulf %196, %197 : vector<8x256xf32>
    %199 = arith.mulf %160, %198 : vector<8x256xf32>
    %200 = arith.addf %193, %199 : vector<8x256xf32>
    %c248_i32 = arith.constant 248 : i32
    %201 = tpu.dynamic_rotate %160 by %c248_i32 dim 1 : vector<8x256xf32>, i32 -> vector<8x256xf32>
    %c0_102 = arith.constant 0 : index
    %c5_103 = arith.constant 5 : index
    %202 = vector.load %arg11[%c0_102, %c5_103] : memref<8x9xf32, #tpu.memory_space<vmem>>, vector<8x1xf32>
    %c5_104 = arith.constant 5 : index
    %c0_105 = arith.constant 0 : index
    %203 = vector.load %arg12[%c5_104, %c0_105] : memref<9x256xf32, #tpu.memory_space<vmem>>, vector<1x256xf32>
    %204 = vector.broadcast %202 : vector<8x1xf32> to vector<8x256xf32>
    %205 = vector.broadcast %203 : vector<1x256xf32> to vector<8x256xf32>
    %206 = arith.mulf %204, %205 : vector<8x256xf32>
    %207 = arith.mulf %201, %206 : vector<8x256xf32>
    %208 = arith.addf %200, %207 : vector<8x256xf32>
    %c136_i32_106 = arith.constant 136 : i32
    %209 = tpu.dynamic_rotate %160 by %c136_i32_106 dim 1 : vector<8x256xf32>, i32 -> vector<8x256xf32>
    %c0_107 = arith.constant 0 : index
    %c6_108 = arith.constant 6 : index
    %210 = vector.load %arg11[%c0_107, %c6_108] : memref<8x9xf32, #tpu.memory_space<vmem>>, vector<8x1xf32>
    %c6_109 = arith.constant 6 : index
    %c0_110 = arith.constant 0 : index
    %211 = vector.load %arg12[%c6_109, %c0_110] : memref<9x256xf32, #tpu.memory_space<vmem>>, vector<1x256xf32>
    %212 = vector.broadcast %210 : vector<8x1xf32> to vector<8x256xf32>
    %213 = vector.broadcast %211 : vector<1x256xf32> to vector<8x256xf32>
    %214 = arith.mulf %212, %213 : vector<8x256xf32>
    %215 = arith.mulf %209, %214 : vector<8x256xf32>
    %216 = arith.addf %208, %215 : vector<8x256xf32>
    %c128_i32_111 = arith.constant 128 : i32
    %217 = tpu.dynamic_rotate %160 by %c128_i32_111 dim 1 : vector<8x256xf32>, i32 -> vector<8x256xf32>
    %c0_112 = arith.constant 0 : index
    %c7_113 = arith.constant 7 : index
    %218 = vector.load %arg11[%c0_112, %c7_113] : memref<8x9xf32, #tpu.memory_space<vmem>>, vector<8x1xf32>
    %c7_114 = arith.constant 7 : index
    %c0_115 = arith.constant 0 : index
    %219 = vector.load %arg12[%c7_114, %c0_115] : memref<9x256xf32, #tpu.memory_space<vmem>>, vector<1x256xf32>
    %220 = vector.broadcast %218 : vector<8x1xf32> to vector<8x256xf32>
    %221 = vector.broadcast %219 : vector<1x256xf32> to vector<8x256xf32>
    %222 = arith.mulf %220, %221 : vector<8x256xf32>
    %223 = arith.mulf %217, %222 : vector<8x256xf32>
    %224 = arith.addf %216, %223 : vector<8x256xf32>
    %c120_i32_116 = arith.constant 120 : i32
    %225 = tpu.dynamic_rotate %160 by %c120_i32_116 dim 1 : vector<8x256xf32>, i32 -> vector<8x256xf32>
    %c0_117 = arith.constant 0 : index
    %c8_118 = arith.constant 8 : index
    %226 = vector.load %arg11[%c0_117, %c8_118] : memref<8x9xf32, #tpu.memory_space<vmem>>, vector<8x1xf32>
    %c8_119 = arith.constant 8 : index
    %c0_120 = arith.constant 0 : index
    %227 = vector.load %arg12[%c8_119, %c0_120] : memref<9x256xf32, #tpu.memory_space<vmem>>, vector<1x256xf32>
    %228 = vector.broadcast %226 : vector<8x1xf32> to vector<8x256xf32>
    %229 = vector.broadcast %227 : vector<1x256xf32> to vector<8x256xf32>
    %230 = arith.mulf %228, %229 : vector<8x256xf32>
    %231 = arith.mulf %225, %230 : vector<8x256xf32>
    %232 = arith.addf %224, %231 : vector<8x256xf32>
    %c0_121 = arith.constant 0 : index
    %c0_122 = arith.constant 0 : index
    %233 = vector.load %arg13[%c0_121, %c0_122] : memref<1x8xf32, #tpu.memory_space<vmem>>, vector<1x8xf32>
    %cst_123 = arith.constant dense<0.000000e+00> : vector<1x256xf32>
    %234 = tpu.matmul %233, %232, %cst_123 {dimension_numbers = #tpu.dot_dimension_numbers<[1], [0], [0], [1], [0, 0, 1, 1], [], []>} : vector<1x8xf32>, vector<8x256xf32>, vector<1x256xf32> -> vector<1x256xf32>
    %c0_124 = arith.constant 0 : index
    %c0_125 = arith.constant 0 : index
    %235 = vector.load %arg14[%c0_124, %c0_125] : memref<1x1xf32, #tpu.memory_space<vmem>>, vector<1x1xf32>
    %236 = vector.broadcast %235 : vector<1x1xf32> to vector<1x256xf32>
    %237 = arith.addf %234, %236 : vector<1x256xf32>
    %238 = arith.negf %237 : vector<1x256xf32>
    %239 = math.exp %238 : vector<1x256xf32>
    %cst_126 = arith.constant 1.000000e+00 : f32
    %240 = vector.broadcast %cst_126 : f32 to vector<1x256xf32>
    %241 = arith.addf %240, %239 : vector<1x256xf32>
    %242 = arith.divf %240, %241 : vector<1x256xf32>
    %243 = vector.broadcast %242 : vector<1x256xf32> to vector<8x256xf32>
    %244 = arith.mulf %243, %3 : vector<8x256xf32>
    %c0_127 = arith.constant 0 : index
    %c0_128 = arith.constant 0 : index
    %c0_129 = arith.constant 0 : index
    %245 = vector.load %arg15[%c0_127, %c0_128, %c0_129] : memref<1x8x256xf32, #tpu.memory_space<vmem>>, vector<1x8x256xf32>
    %246 = vector.shape_cast %245 : vector<1x8x256xf32> to vector<8x256xf32>
    %247 = vector.shape_cast %244 : vector<8x256xf32> to vector<1x8x256xf32>
    tpu.vector_store %arg15[%c0_127, %c0_128, %c0_129], %247 {strides = array<i32>} : memref<1x8x256xf32, #tpu.memory_space<vmem>>, vector<1x8x256xf32>,
    return
  }
  func.func @transform_0(%arg0: i32) -> (i32, i32, i32) {
    %c0_i32 = arith.constant 0 : i32
    %c0_i32_0 = arith.constant 0 : i32
    %c0_i32_1 = arith.constant 0 : i32
    return %arg0, %c0_i32, %c0_i32_0 : i32, i32, i32
  }
  func.func @transform_1(%arg0: i32) -> (i32, i32, i32) {
    %c0_i32 = arith.constant 0 : i32
    %c0_i32_0 = arith.constant 0 : i32
    %c0_i32_1 = arith.constant 0 : i32
    return %arg0, %c0_i32, %c0_i32_0 : i32, i32, i32
  }
  func.func @transform_2(%arg0: i32) -> (i32, i32) {
    %c0_i32 = arith.constant 0 : i32
    %c0_i32_0 = arith.constant 0 : i32
    %c0_i32_1 = arith.constant 0 : i32
    return %c0_i32, %c0_i32_0 : i32, i32
  }
  func.func @transform_3(%arg0: i32) -> (i32, i32) {
    %c0_i32 = arith.constant 0 : i32
    %c0_i32_0 = arith.constant 0 : i32
    %c0_i32_1 = arith.constant 0 : i32
    return %c0_i32, %c0_i32_0 : i32, i32
  }
  func.func @transform_4(%arg0: i32) -> (i32, i32) {
    %c0_i32 = arith.constant 0 : i32
    %c0_i32_0 = arith.constant 0 : i32
    %c0_i32_1 = arith.constant 0 : i32
    return %c0_i32, %c0_i32_0 : i32, i32
  }
  func.func @transform_5(%arg0: i32) -> (i32, i32) {
    %c0_i32 = arith.constant 0 : i32
    %c0_i32_0 = arith.constant 0 : i32
    %c0_i32_1 = arith.constant 0 : i32
    return %c0_i32, %c0_i32_0 : i32, i32
  }
  func.func @transform_6(%arg0: i32) -> (i32, i32) {
    %c0_i32 = arith.constant 0 : i32
    %c0_i32_0 = arith.constant 0 : i32
    %c0_i32_1 = arith.constant 0 : i32
    return %c0_i32, %c0_i32_0 : i32, i32
  }
  func.func @transform_7(%arg0: i32) -> (i32, i32) {
    %c0_i32 = arith.constant 0 : i32
    %c0_i32_0 = arith.constant 0 : i32
    %c0_i32_1 = arith.constant 0 : i32
    return %c0_i32, %c0_i32_0 : i32, i32
  }
  func.func @transform_8(%arg0: i32) -> (i32, i32) {
    %c0_i32 = arith.constant 0 : i32
    %c0_i32_0 = arith.constant 0 : i32
    %c0_i32_1 = arith.constant 0 : i32
    return %c0_i32, %c0_i32_0 : i32, i32
  }
  func.func @transform_9(%arg0: i32) -> (i32, i32) {
    %c0_i32 = arith.constant 0 : i32
    %c0_i32_0 = arith.constant 0 : i32
    %c0_i32_1 = arith.constant 0 : i32
    return %c0_i32, %c0_i32_0 : i32, i32
  }
  func.func @transform_10(%arg0: i32) -> (i32, i32) {
    %c0_i32 = arith.constant 0 : i32
    %c0_i32_0 = arith.constant 0 : i32
    %c0_i32_1 = arith.constant 0 : i32
    return %c0_i32, %c0_i32_0 : i32, i32
  }
  func.func @transform_11(%arg0: i32) -> (i32, i32) {
    %c0_i32 = arith.constant 0 : i32
    %c0_i32_0 = arith.constant 0 : i32
    %c0_i32_1 = arith.constant 0 : i32
    return %c0_i32, %c0_i32_0 : i32, i32
  }
  func.func @transform_12(%arg0: i32) -> (i32, i32) {
    %c0_i32 = arith.constant 0 : i32
    %c0_i32_0 = arith.constant 0 : i32
    %c0_i32_1 = arith.constant 0 : i32
    return %c0_i32, %c0_i32_0 : i32, i32
  }
  func.func @transform_13(%arg0: i32) -> (i32, i32) {
    %c0_i32 = arith.constant 0 : i32
    %c0_i32_0 = arith.constant 0 : i32
    %c0_i32_1 = arith.constant 0 : i32
    return %c0_i32, %c0_i32_0 : i32, i32
  }
  func.func @transform_14(%arg0: i32) -> (i32, i32, i32) {
    %c0_i32 = arith.constant 0 : i32
    %c0_i32_0 = arith.constant 0 : i32
    %c0_i32_1 = arith.constant 0 : i32
    return %arg0, %c0_i32, %c0_i32_0 : i32, i32, i32
  }
}

</mosaic_0001>

<llo_original>
// kernel: tpu_custom_call.1
$region0: #{tpu_custom_call.1}
  #allocation0 [shape = 'u32[]', space=smem, size = 0x4, offset = 0x4, fixed_abs, tag = 'smem constant byte address 0x4 - core index']
  #allocation1 [shape = 'u32[144,128]{1,0:T(1,128)}', space=vmem, size = 0x12000, scoped, tag = 'internal scratch']
  #allocation2 [shape = 'f32[1,1]{1,0:T(1,128)S(1)}', space=vmem, size = 0x200, scoped, tag = 'scoped memory for tpu_custom_call.1']
  %s0 = inlined_call_operand.hbm [shape: f32[2,8,256], index: 0, kind: input, shape index: {}]
  %s1 = inlined_call_operand.hbm [shape: f32[2,8,256], index: 1, kind: input, shape index: {}]
  %s2 = inlined_call_operand.hbm [shape: f32[8,9], index: 2, kind: input, shape index: {}]
  %s3 = inlined_call_operand.vmem [shape: f32[9,256], index: 3, kind: input, shape index: {}]
  %s4 = inlined_call_operand.hbm [shape: f32[8,8], index: 4, kind: input, shape index: {}]
  %s5 = inlined_call_operand.vmem [shape: f32[8,1], index: 5, kind: input, shape index: {}]
  %s6 = inlined_call_operand.vmem [shape: f32[8,9], index: 6, kind: input, shape index: {}]
  %s7 = inlined_call_operand.hbm [shape: f32[9,256], index: 7, kind: input, shape index: {}]
  %s8 = inlined_call_operand.vmem [shape: f32[8,8], index: 8, kind: input, shape index: {}]
  %s9 = inlined_call_operand.vmem [shape: f32[8,1], index: 9, kind: input, shape index: {}]
  %s10 = inlined_call_operand.vmem [shape: f32[8,9], index: 10, kind: input, shape index: {}]
  %s11 = inlined_call_operand.hbm [shape: f32[9,256], index: 11, kind: input, shape index: {}]
  %s12 = inlined_call_operand.vmem [shape: f32[1,8], index: 12, kind: input, shape index: {}]
  %s13 = inlined_call_operand.<no memory space> [shape: f32[1,1], index: 13, kind: input, shape index: {}]
  %s14 = inlined_call_operand.hbm [shape: f32[2,8,256], index: 14, kind: output, shape index: {}]
  %s15 = sld [smem:[#allocation0]]
  $region113: #{tpu_custom_call.1} parent=0
    _
  %s17 = ssub.s32 1, %s15
  %s18 = scalar_select 0, %s17, %s15
  %v19 = vstv %s13
  %20 = vst [vmem:[#allocation2] sm:$0x1] %v19
  $region1: #{tpu_custom_call.1} parent=0
    #allocation3 [shape = 'u8[16384]{0}', space=vmem, size = 0x4000, scoped, tag = 'input window, operand 0']
    #allocation4 [shape = 's32[2]{0}', space=sflag, size = 0x8, scoped, tag = 'scoped memory for tpu_custom_call.1']
    #allocation5 [shape = 's32[2]{0}', space=sflag, size = 0x8, scoped, tag = 'scoped memory for tpu_custom_call.1']
    #allocation6 [shape = 'u8[16384]{0}', space=vmem, size = 0x4000, scoped, tag = 'input window, operand 1']
    #allocation7 [shape = 's32[2]{0}', space=sflag, size = 0x8, scoped, tag = 'scoped memory for tpu_custom_call.1']
    #allocation8 [shape = 'u8[4096]{0}', space=vmem, size = 0x1000, scoped, tag = 'input window, operand 2, single buffered']
    #allocation9 [shape = 'u8[4096]{0}', space=vmem, size = 0x1000, scoped, tag = 'input window, operand 4, single buffered']
    #allocation10 [shape = 's32[1]{0}', space=sflag, size = 0x4, scoped, tag = 'scoped memory for tpu_custom_call.1']
    #allocation11 [shape = 'u8[16384]{0}', space=vmem, size = 0x4000, scoped, tag = 'input window, operand 7, single buffered']
    #allocation12 [shape = 'u8[16384]{0}', space=vmem, size = 0x4000, scoped, tag = 'input window, operand 11, single buffered']
    #allocation13 [shape = 's32[1]{0}', space=sflag, size = 0x4, scoped, tag = 'scoped memory for tpu_custom_call.1']
    #allocation14 [shape = 'u8[16384]{0}', space=vmem, size = 0x4000, scoped, tag = 'output window, operand 0']
    %21 = vsyncpa [#allocation4], 0
    %s22 = scalar_lea.sflag [#allocation4], 1
    %23 = vsyncpa %s22, 0
    %24 = vsyncpa [#allocation7], 0
    %s25 = scalar_lea.sflag [#allocation7], 1
    %26 = vsyncpa %s25, 0
    %27 = vsyncpa [#allocation10], 0
    %28 = vsyncpa [#allocation13], 0
    %29 = vsyncpa [#allocation5], 0
    %s30 = scalar_lea.sflag [#allocation5], 1
    %31 = vsyncpa %s30, 0
    loop: start=0, step=1, limit=4
    $region2: #{tpu_custom_call.1} parent=1 // loop_pre_header
      _
    $region3: #{tpu_custom_call.1} parent=1 // loop_header
      %s33 = sphi 0, %s37
      %p34 = scmp.ge.s32.totalorder %s33, 4
      %s43 = sphi 0, %s45
      %s46 = sphi 0, %s43
      %s47 = sphi 0, %s46
      %s63 = sphi 0, %s47
      %s69 = sphi 0, %s71
      %s72 = sphi 0, %s69
      %s73 = sphi 0, %s72
      %s89 = sphi 0, %s73
      %s93 = sphi 0, %s93
      %s95 = sphi 0, %s93
      %s96 = sphi 0, %s95
      %s110 = sphi 0, %s96
      %s114 = sphi 0, %s114
      %s116 = sphi 0, %s114
      %s117 = sphi 0, %s116
      %s131 = sphi 0, %s117
      %s135 = sphi 0, %s135
      %s137 = sphi 0, %s135
      %s138 = sphi 0, %s137
      %s152 = sphi 0, %s138
      %s156 = sphi 0, %s156
      %s158 = sphi 0, %s156
      %s159 = sphi 0, %s158
      %s173 = sphi 0, %s159
      %s177 = sphi 0, %s177
      %s179 = sphi 0, %s177
      %s180 = sphi 0, %s179
      %s194 = sphi 0, %s180
      %s198 = sphi 0, %s198
      %s200 = sphi 0, %s198
      %s201 = sphi 0, %s200
      %s215 = sphi 0, %s201
      %s219 = sphi 0, %s219
      %s221 = sphi 0, %s219
      %s222 = sphi 0, %s221
      %s236 = sphi 0, %s222
      %s240 = sphi 0, %s240
      %s242 = sphi 0, %s240
      %s243 = sphi 0, %s242
      %s257 = sphi 0, %s243
      %s261 = sphi 0, %s261
      %s263 = sphi 0, %s261
      %s264 = sphi 0, %s263
      %s278 = sphi 0, %s264
      %s282 = sphi 0, %s282
      %s284 = sphi 0, %s282
      %s285 = sphi 0, %s284
      %s299 = sphi 0, %s285
      %s303 = sphi 0, %s303
      %s305 = sphi 0, %s303
      %s306 = sphi 0, %s305
      %s320 = sphi 0, %s306
      %s324 = sphi 0, %s324
      %s326 = sphi 0, %s324
      %s327 = sphi 0, %s326
      %s341 = sphi 0, %s327
      %s347 = sphi 0, %s349
      %s350 = sphi 0, %s347
      %s351 = sphi 0, %s350
      %s367 = sphi 0, %s351
    $region4: #{tpu_custom_call.1} parent=1 // loop_header_branch
      %36 = sbr.rel (%p34) target = $region8
    $region5: #{tpu_custom_call.1} parent=1 // loop_body
      %s38 = ssub.s32 %s33, 1
      %s39 = ssub.s32 %s33, 2
      %s40 = sadd.s32 %s33, 1
      %s41 = ssub.s32 %s33, %s40
      %p42 = scmp.eq.s32.totalorder %s41, 0
      %s44 = sadd.s32 %s43, 1
      %s45 = scalar_select %p42, %s43, %s44
      %p48 = pneg %p42
      %p49 = scmp.eq.s32.totalorder %s33, 1
      %p50 = por %p48, %p49
      %p51 = scmp.ne.s32.totalorder %s43, %s46
      %p52 = scmp.eq.s32.totalorder %s33, 0
      %p53 = por %p51, %p52
      %p54 = scmp.ne.s32.totalorder %s43, %s46
      %p55 = scmp.eq.s32.totalorder %s38, 1
      %p56 = por %p54, %p55
      %p57 = scmp.ne.s32.totalorder %s46, %s47
      %p58 = scmp.eq.s32.totalorder %s38, 0
      %p59 = por %p57, %p58
      %p60 = scmp.ne.s32.totalorder %s46, %s47
      %p61 = scmp.eq.s32.totalorder %s39, 1
      %p62 = por %p60, %p61
      %p64 = scmp.ne.s32.totalorder %s47, %s63
      %p65 = scmp.eq.s32.totalorder %s39, 0
      %p66 = por %p64, %p65
      %s67 = ssub.s32 %s33, %s40
      %p68 = scmp.eq.s32.totalorder %s67, 0
      %s70 = sadd.s32 %s69, 1
      %s71 = scalar_select %p68, %s69, %s70
      %p74 = pneg %p68
      %p75 = scmp.eq.s32.totalorder %s33, 1
      %p76 = por %p74, %p75
      %p77 = scmp.ne.s32.totalorder %s69, %s72
      %p78 = scmp.eq.s32.totalorder %s33, 0
      %p79 = por %p77, %p78
      %p80 = scmp.ne.s32.totalorder %s69, %s72
      %p81 = scmp.eq.s32.totalorder %s38, 1
      %p82 = por %p80, %p81
      %p83 = scmp.ne.s32.totalorder %s72, %s73
      %p84 = scmp.eq.s32.totalorder %s38, 0
      %p85 = por %p83, %p84
      %p86 = scmp.ne.s32.totalorder %s72, %s73
      %p87 = scmp.eq.s32.totalorder %s39, 1
      %p88 = por %p86, %p87
      %p90 = scmp.ne.s32.totalorder %s73, %s89
      %p91 = scmp.eq.s32.totalorder %s39, 0
      %p92 = por %p90, %p91
      %s94 = sadd.s32 %s93, 1
      %p97 = scmp.eq.s32.totalorder %s33, 1
      %p98 = scmp.ne.s32.totalorder %s93, %s95
      %p99 = scmp.eq.s32.totalorder %s33, 0
      %p100 = por %p98, %p99
      %p101 = scmp.ne.s32.totalorder %s93, %s95
      %p102 = scmp.eq.s32.totalorder %s38, 1
      %p103 = por %p101, %p102
      %p104 = scmp.ne.s32.totalorder %s95, %s96
      %p105 = scmp.eq.s32.totalorder %s38, 0
      %p106 = por %p104, %p105
      %p107 = scmp.ne.s32.totalorder %s95, %s96
      %p108 = scmp.eq.s32.totalorder %s39, 1
      %p109 = por %p107, %p108
      %p111 = scmp.ne.s32.totalorder %s96, %s110
      %p112 = scmp.eq.s32.totalorder %s39, 0
      %p113 = por %p111, %p112
      %s115 = sadd.s32 %s114, 1
      %p118 = scmp.eq.s32.totalorder %s33, 1
      %p119 = scmp.ne.s32.totalorder %s114, %s116
      %p120 = scmp.eq.s32.totalorder %s33, 0
      %p121 = por %p119, %p120
      %p122 = scmp.ne.s32.totalorder %s114, %s116
      %p123 = scmp.eq.s32.totalorder %s38, 1
      %p124 = por %p122, %p123
      %p125 = scmp.ne.s32.totalorder %s116, %s117
      %p126 = scmp.eq.s32.totalorder %s38, 0
      %p127 = por %p125, %p126
      %p128 = scmp.ne.s32.totalorder %s116, %s117
      %p129 = scmp.eq.s32.totalorder %s39, 1
      %p130 = por %p128, %p129
      %p132 = scmp.ne.s32.totalorder %s117, %s131
      %p133 = scmp.eq.s32.totalorder %s39, 0
      %p134 = por %p132, %p133
      %s136 = sadd.s32 %s135, 1
      %p139 = scmp.eq.s32.totalorder %s33, 1
      %p140 = scmp.ne.s32.totalorder %s135, %s137
      %p141 = scmp.eq.s32.totalorder %s33, 0
      %p142 = por %p140, %p141
      %p143 = scmp.ne.s32.totalorder %s135, %s137
      %p144 = scmp.eq.s32.totalorder %s38, 1
      %p145 = por %p143, %p144
      %p146 = scmp.ne.s32.totalorder %s137, %s138
      %p147 = scmp.eq.s32.totalorder %s38, 0
      %p148 = por %p146, %p147
      %p149 = scmp.ne.s32.totalorder %s137, %s138
      %p150 = scmp.eq.s32.totalorder %s39, 1
      %p151 = por %p149, %p150
      %p153 = scmp.ne.s32.totalorder %s138, %s152
      %p154 = scmp.eq.s32.totalorder %s39, 0
      %p155 = por %p153, %p154
      %s157 = sadd.s32 %s156, 1
      %p160 = scmp.eq.s32.totalorder %s33, 1
      %p161 = scmp.ne.s32.totalorder %s156, %s158
      %p162 = scmp.eq.s32.totalorder %s33, 0
      %p163 = por %p161, %p162
      %p164 = scmp.ne.s32.totalorder %s156, %s158
      %p165 = scmp.eq.s32.totalorder %s38, 1
      %p166 = por %p164, %p165
      %p167 = scmp.ne.s32.totalorder %s158, %s159
      %p168 = scmp.eq.s32.totalorder %s38, 0
      %p169 = por %p167, %p168
      %p170 = scmp.ne.s32.totalorder %s158, %s159
      %p171 = scmp.eq.s32.totalorder %s39, 1
      %p172 = por %p170, %p171
      %p174 = scmp.ne.s32.totalorder %s159, %s173
      %p175 = scmp.eq.s32.totalorder %s39, 0
      %p176 = por %p174, %p175
      %s178 = sadd.s32 %s177, 1
      %p181 = scmp.eq.s32.totalorder %s33, 1
      %p182 = scmp.ne.s32.totalorder %s177, %s179
      %p183 = scmp.eq.s32.totalorder %s33, 0
      %p184 = por %p182, %p183
      %p185 = scmp.ne.s32.totalorder %s177, %s179
      %p186 = scmp.eq.s32.totalorder %s38, 1
      %p187 = por %p185, %p186
      %p188 = scmp.ne.s32.totalorder %s179, %s180
      %p189 = scmp.eq.s32.totalorder %s38, 0
      %p190 = por %p188, %p189
      %p191 = scmp.ne.s32.totalorder %s179, %s180
      %p192 = scmp.eq.s32.totalorder %s39, 1
      %p193 = por %p191, %p192
      %p195 = scmp.ne.s32.totalorder %s180, %s194
      %p196 = scmp.eq.s32.totalorder %s39, 0
      %p197 = por %p195, %p196
      %s199 = sadd.s32 %s198, 1
      %p202 = scmp.eq.s32.totalorder %s33, 1
      %p203 = scmp.ne.s32.totalorder %s198, %s200
      %p204 = scmp.eq.s32.totalorder %s33, 0
      %p205 = por %p203, %p204
      %p206 = scmp.ne.s32.totalorder %s198, %s200
      %p207 = scmp.eq.s32.totalorder %s38, 1
      %p208 = por %p206, %p207
      %p209 = scmp.ne.s32.totalorder %s200, %s201
      %p210 = scmp.eq.s32.totalorder %s38, 0
      %p211 = por %p209, %p210
      %p212 = scmp.ne.s32.totalorder %s200, %s201
      %p213 = scmp.eq.s32.totalorder %s39, 1
      %p214 = por %p212, %p213
      %p216 = scmp.ne.s32.totalorder %s201, %s215
      %p217 = scmp.eq.s32.totalorder %s39, 0
      %p218 = por %p216, %p217
      %s220 = sadd.s32 %s219, 1
      %p223 = scmp.eq.s32.totalorder %s33, 1
      %p224 = scmp.ne.s32.totalorder %s219, %s221
      %p225 = scmp.eq.s32.totalorder %s33, 0
      %p226 = por %p224, %p225
      %p227 = scmp.ne.s32.totalorder %s219, %s221
      %p228 = scmp.eq.s32.totalorder %s38, 1
      %p229 = por %p227, %p228
      %p230 = scmp.ne.s32.totalorder %s221, %s222
      %p231 = scmp.eq.s32.totalorder %s38, 0
      %p232 = por %p230, %p231
      %p233 = scmp.ne.s32.totalorder %s221, %s222
      %p234 = scmp.eq.s32.totalorder %s39, 1
      %p235 = por %p233, %p234
      %p237 = scmp.ne.s32.totalorder %s222, %s236
      %p238 = scmp.eq.s32.totalorder %s39, 0
      %p239 = por %p237, %p238
      %s241 = sadd.s32 %s240, 1
      %p244 = scmp.eq.s32.totalorder %s33, 1
      %p245 = scmp.ne.s32.totalorder %s240, %s242
      %p246 = scmp.eq.s32.totalorder %s33, 0
      %p247 = por %p245, %p246
      %p248 = scmp.ne.s32.totalorder %s240, %s242
      %p249 = scmp.eq.s32.totalorder %s38, 1
      %p250 = por %p248, %p249
      %p251 = scmp.ne.s32.totalorder %s242, %s243
      %p252 = scmp.eq.s32.totalorder %s38, 0
      %p253 = por %p251, %p252
      %p254 = scmp.ne.s32.totalorder %s242, %s243
      %p255 = scmp.eq.s32.totalorder %s39, 1
      %p256 = por %p254, %p255
      %p258 = scmp.ne.s32.totalorder %s243, %s257
      %p259 = scmp.eq.s32.totalorder %s39, 0
      %p260 = por %p258, %p259
      %s262 = sadd.s32 %s261, 1
      %p265 = scmp.eq.s32.totalorder %s33, 1
      %p266 = scmp.ne.s32.totalorder %s261, %s263
      %p267 = scmp.eq.s32.totalorder %s33, 0
      %p268 = por %p266, %p267
      %p269 = scmp.ne.s32.totalorder %s261, %s263
      %p270 = scmp.eq.s32.totalorder %s38, 1
      %p271 = por %p269, %p270
      %p272 = scmp.ne.s32.totalorder %s263, %s264
      %p273 = scmp.eq.s32.totalorder %s38, 0
      %p274 = por %p272, %p273
      %p275 = scmp.ne.s32.totalorder %s263, %s264
      %p276 = scmp.eq.s32.totalorder %s39, 1
      %p277 = por %p275, %p276
      %p279 = scmp.ne.s32.totalorder %s264, %s278
      %p280 = scmp.eq.s32.totalorder %s39, 0
      %p281 = por %p279, %p280
      %s283 = sadd.s32 %s282, 1
      %p286 = scmp.eq.s32.totalorder %s33, 1
      %p287 = scmp.ne.s32.totalorder %s282, %s284
      %p288 = scmp.eq.s32.totalorder %s33, 0
      %p289 = por %p287, %p288
      %p290 = scmp.ne.s32.totalorder %s282, %s284
      %p291 = scmp.eq.s32.totalorder %s38, 1
      %p292 = por %p290, %p291
      %p293 = scmp.ne.s32.totalorder %s284, %s285
      %p294 = scmp.eq.s32.totalorder %s38, 0
      %p295 = por %p293, %p294
      %p296 = scmp.ne.s32.totalorder %s284, %s285
      %p297 = scmp.eq.s32.totalorder %s39, 1
      %p298 = por %p296, %p297
      %p300 = scmp.ne.s32.totalorder %s285, %s299
      %p301 = scmp.eq.s32.totalorder %s39, 0
      %p302 = por %p300, %p301
      %s304 = sadd.s32 %s303, 1
      %p307 = scmp.eq.s32.totalorder %s33, 1
      %p308 = scmp.ne.s32.totalorder %s303, %s305
      %p309 = scmp.eq.s32.totalorder %s33, 0
      %p310 = por %p308, %p309
      %p311 = scmp.ne.s32.totalorder %s303, %s305
      %p312 = scmp.eq.s32.totalorder %s38, 1
      %p313 = por %p311, %p312
      %p314 = scmp.ne.s32.totalorder %s305, %s306
      %p315 = scmp.eq.s32.totalorder %s38, 0
      %p316 = por %p314, %p315
      %p317 = scmp.ne.s32.totalorder %s305, %s306
      %p318 = scmp.eq.s32.totalorder %s39, 1
      %p319 = por %p317, %p318
      %p321 = scmp.ne.s32.totalorder %s306, %s320
      %p322 = scmp.eq.s32.totalorder %s39, 0
      %p323 = por %p321, %p322
      %s325 = sadd.s32 %s324, 1
      %p328 = scmp.eq.s32.totalorder %s33, 1
      %p329 = scmp.ne.s32.totalorder %s324, %s326
      %p330 = scmp.eq.s32.totalorder %s33, 0
      %p331 = por %p329, %p330
      %p332 = scmp.ne.s32.totalorder %s324, %s326
      %p333 = scmp.eq.s32.totalorder %s38, 1
      %p334 = por %p332, %p333
      %p335 = scmp.ne.s32.totalorder %s326, %s327
      %p336 = scmp.eq.s32.totalorder %s38, 0
      %p337 = por %p335, %p336
      %p338 = scmp.ne.s32.totalorder %s326, %s327
      %p339 = scmp.eq.s32.totalorder %s39, 1
      %p340 = por %p338, %p339
      %p342 = scmp.ne.s32.totalorder %s327, %s341
      %p343 = scmp.eq.s32.totalorder %s39, 0
      %p344 = por %p342, %p343
      %s345 = ssub.s32 %s33, %s40
      %p346 = scmp.eq.s32.totalorder %s345, 0
      %s348 = sadd.s32 %s347, 1
      %s349 = scalar_select %p346, %s347, %s348
      %p352 = pneg %p346
      %p353 = scmp.eq.s32.totalorder %s33, 1
      %p354 = por %p352, %p353
      %p355 = scmp.ne.s32.totalorder %s347, %s350
      %p356 = scmp.eq.s32.totalorder %s33, 0
      %p357 = por %p355, %p356
      %p358 = scmp.ne.s32.totalorder %s347, %s350
      %p359 = scmp.eq.s32.totalorder %s38, 1
      %p360 = por %p358, %p359
      %p361 = scmp.ne.s32.totalorder %s350, %s351
      %p362 = scmp.eq.s32.totalorder %s38, 0
      %p363 = por %p361, %p362
      %p364 = scmp.ne.s32.totalorder %s350, %s351
      %p365 = scmp.eq.s32.totalorder %s39, 1
      %p366 = por %p364, %p365
      %p368 = scmp.ne.s32.totalorder %s351, %s367
      %p369 = scmp.eq.s32.totalorder %s39, 0
      %p370 = por %p368, %p369
      %p371 = scmp.le.s32.totalorder 1, %s33
      %p372 = scmp.lt.s32.totalorder %s33, 3
      %p373 = pnand %p371, %p372
      %p374 = pneg %p373
      // Predicated region
      $region9: #{tpu_custom_call.1} parent=5 // pred_check
        _
      $region10: #{tpu_custom_call.1} parent=5 // pred_check_branch
        %376 = sbr.rel (%p373) target = $region12
      $region11: #{tpu_custom_call.1} parent=5 // pred_region
        %s377 = ssub.s32 %s33, 1
        // Predicated region
        $region13: #{tpu_custom_call.1} parent=11 // pred_check
          %p378 = pneg %p106
        $region14: #{tpu_custom_call.1} parent=11 // pred_check_branch
          %380 = sbr.rel (%p378) target = $region16
        $region15: #{tpu_custom_call.1} parent=11 // pred_region
          %s382 = ssub.s32 128, 128
          %383 = vsyncadd [#allocation7], %s382
          %s385 = sshll.u32 [#allocation8], 4
          %s386 = int_to_ptr.vmem [resolvable:$true] %s385
          %388 = dma.hbm_to_vmem [thread:$0]  %s2, 128, %s386, [#allocation7]
        $region16: #{tpu_custom_call.1} parent=11 // pred_fallthru
          _
        // Predicated region
        $region17: #{tpu_custom_call.1} parent=11 // pred_check
          %p389 = pneg %p127
        $region18: #{tpu_custom_call.1} parent=11 // pred_check_branch
          %391 = sbr.rel (%p389) target = $region20
        $region19: #{tpu_custom_call.1} parent=11 // pred_region
          _
        $region20: #{tpu_custom_call.1} parent=11 // pred_fallthru
          _
        // Predicated region
        $region21: #{tpu_custom_call.1} parent=11 // pred_check
          %p392 = pneg %p148
        $region22: #{tpu_custom_call.1} parent=11 // pred_check_branch
          %394 = sbr.rel (%p392) target = $region24
        $region23: #{tpu_custom_call.1} parent=11 // pred_region
          %s396 = ssub.s32 128, 128
          %397 = vsyncadd [#allocation10], %s396
          %s399 = sshll.u32 [#allocation9], 4
          %s400 = int_to_ptr.vmem [resolvable:$true] %s399
          %402 = dma.hbm_to_vmem [thread:$0]  %s4, 128, %s400, [#allocation10]
        $region24: #{tpu_custom_call.1} parent=11 // pred_fallthru
          _
        // Predicated region
        $region25: #{tpu_custom_call.1} parent=11 // pred_check
          %p403 = pneg %p169
        $region26: #{tpu_custom_call.1} parent=11 // pred_check_branch
          %405 = sbr.rel (%p403) target = $region28
        $region27: #{tpu_custom_call.1} parent=11 // pred_region
          _
        $region28: #{tpu_custom_call.1} parent=11 // pred_fallthru
          _
        // Predicated region
        $region29: #{tpu_custom_call.1} parent=11 // pred_check
          %p406 = pneg %p190
        $region30: #{tpu_custom_call.1} parent=11 // pred_check_branch
          %408 = sbr.rel (%p406) target = $region32
        $region31: #{tpu_custom_call.1} parent=11 // pred_region
          _
        $region32: #{tpu_custom_call.1} parent=11 // pred_fallthru
          _
        // Predicated region
        $region33: #{tpu_custom_call.1} parent=11 // pred_check
          %p409 = pneg %p211
        $region34: #{tpu_custom_call.1} parent=11 // pred_check_branch
          %411 = sbr.rel (%p409) target = $region36
        $region35: #{tpu_custom_call.1} parent=11 // pred_region
          %s413 = ssub.s32 512, 512
          %414 = vsyncadd [#allocation10], %s413
          %s415 = sshll.u32 [#allocation11], 4
          %s416 = int_to_ptr.vmem [resolvable:$true] %s415
          %421 = dma.hbm_to_vmem [thread:$0]  %s7, 512, %s416, [#allocation10], 256, 256, 16
        $region36: #{tpu_custom_call.1} parent=11 // pred_fallthru
          _
        // Predicated region
        $region37: #{tpu_custom_call.1} parent=11 // pred_check
          %p422 = pneg %p232
        $region38: #{tpu_custom_call.1} parent=11 // pred_check_branch
          %424 = sbr.rel (%p422) target = $region40
        $region39: #{tpu_custom_call.1} parent=11 // pred_region
          _
        $region40: #{tpu_custom_call.1} parent=11 // pred_fallthru
          _
        // Predicated region
        $region41: #{tpu_custom_call.1} parent=11 // pred_check
          %p425 = pneg %p253
        $region42: #{tpu_custom_call.1} parent=11 // pred_check_branch
          %427 = sbr.rel (%p425) target = $region44
        $region43: #{tpu_custom_call.1} parent=11 // pred_region
          _
        $region44: #{tpu_custom_call.1} parent=11 // pred_fallthru
          _
        // Predicated region
        $region45: #{tpu_custom_call.1} parent=11 // pred_check
          %p428 = pneg %p274
        $region46: #{tpu_custom_call.1} parent=11 // pred_check_branch
          %430 = sbr.rel (%p428) target = $region48
        $region47: #{tpu_custom_call.1} parent=11 // pred_region
          _
        $region48: #{tpu_custom_call.1} parent=11 // pred_fallthru
          _
        // Predicated region
        $region49: #{tpu_custom_call.1} parent=11 // pred_check
          %p431 = pneg %p295
        $region50: #{tpu_custom_call.1} parent=11 // pred_check_branch
          %433 = sbr.rel (%p431) target = $region52
        $region51: #{tpu_custom_call.1} parent=11 // pred_region
          %s435 = ssub.s32 512, 512
          %436 = vsyncadd [#allocation13], %s435
          %s437 = sshll.u32 [#allocation12], 4
          %s438 = int_to_ptr.vmem [resolvable:$true] %s437
          %443 = dma.hbm_to_vmem [thread:$0]  %s11, 512, %s438, [#allocation13], 256, 256, 16
        $region52: #{tpu_custom_call.1} parent=11 // pred_fallthru
          _
        // Predicated region
        $region53: #{tpu_custom_call.1} parent=11 // pred_check
          %p444 = pneg %p316
        $region54: #{tpu_custom_call.1} parent=11 // pred_check_branch
          %446 = sbr.rel (%p444) target = $region56
        $region55: #{tpu_custom_call.1} parent=11 // pred_region
          _
        $region56: #{tpu_custom_call.1} parent=11 // pred_fallthru
          _
        // Predicated region
        $region57: #{tpu_custom_call.1} parent=11 // pred_check
          %p447 = pneg %p337
        $region58: #{tpu_custom_call.1} parent=11 // pred_check_branch
          %449 = sbr.rel (%p447) target = $region60
        $region59: #{tpu_custom_call.1} parent=11 // pred_region
          _
        $region60: #{tpu_custom_call.1} parent=11 // pred_fallthru
          _
      $region12: #{tpu_custom_call.1} parent=5 // pred_fallthru
        _
      %p450 = scmp.lt.s32.totalorder %s33, 2
      // Predicated region
      $region61: #{tpu_custom_call.1} parent=5 // pred_check
        %p451 = pneg %p450
      $region62: #{tpu_custom_call.1} parent=5 // pred_check_branch
        %453 = sbr.rel (%p451) target = $region64
      $region63: #{tpu_custom_call.1} parent=5 // pred_region
        // Predicated region
        $region65: #{tpu_custom_call.1} parent=63 // pred_check
          %p454 = pneg %p53
        $region66: #{tpu_custom_call.1} parent=63 // pred_check_branch
          %456 = sbr.rel (%p454) target = $region68
        $region67: #{tpu_custom_call.1} parent=63 // pred_region
          %s457 = sand.u32 %s43, 1
          %s458 = scalar_lea.sflag [#allocation4], %s457
          %s459 = sand.u32 %s43, 1
          %s460 = smul.addr %s459, 16
          %s461 = scalar_lea.vmem [#allocation3], %s460
          %s463 = ssub.s32 256, 256
          %464 = vsyncadd %s458, %s463
          %s465 = smul.addr %s33, 2
          %s466 = smul.addr %s465, 128
          %s467 = scalar_lea.hbm %s0, %s466
          %s469 = sshll.u32 %s461, 4
          %s470 = int_to_ptr.vmem [resolvable:$true] %s469
          %472 = dma.hbm_to_vmem [thread:$0]  %s467, 256, %s470, %s458
        $region68: #{tpu_custom_call.1} parent=63 // pred_fallthru
          _
        // Predicated region
        $region69: #{tpu_custom_call.1} parent=63 // pred_check
          %p473 = pneg %p79
        $region70: #{tpu_custom_call.1} parent=63 // pred_check_branch
          %475 = sbr.rel (%p473) target = $region72
        $region71: #{tpu_custom_call.1} parent=63 // pred_region
          %s476 = sand.u32 %s33, 1
          %s477 = scalar_lea.sflag [#allocation7], %s476
          %s478 = sand.u32 %s69, 1
          %s479 = smul.addr %s478, 16
          %s480 = scalar_lea.vmem [#allocation6], %s479
          %s482 = ssub.s32 256, 256
          %483 = vsyncadd %s477, %s482
          %s484 = smul.addr %s33, 2
          %s485 = smul.addr %s484, 128
          %s486 = scalar_lea.hbm %s1, %s485
          %s488 = sshll.u32 %s480, 4
          %s489 = int_to_ptr.vmem [resolvable:$true] %s488
          %491 = dma.hbm_to_vmem [thread:$0]  %s486, 256, %s489, %s477
        $region72: #{tpu_custom_call.1} parent=63 // pred_fallthru
          _
      $region64: #{tpu_custom_call.1} parent=5 // pred_fallthru
        _
      %p492 = scmp.le.s32.totalorder 1, %s33
      %p493 = scmp.lt.s32.totalorder %s33, 3
      %p494 = pnand %p492, %p493
      %p495 = pneg %p494
      // Predicated region
      $region73: #{tpu_custom_call.1} parent=5 // pred_check
        _
      $region74: #{tpu_custom_call.1} parent=5 // pred_check_branch
        %497 = sbr.rel (%p494) target = $region76
      $region75: #{tpu_custom_call.1} parent=5 // pred_region
        %s498 = ssub.s32 %s33, 1
        %s499 = sand.u32 %s46, 1
        %s500 = scalar_lea.sflag [#allocation4], %s499
        %s501 = sand.u32 %s46, 1
        %s502 = smul.addr %s501, 16
        %s503 = scalar_lea.vmem [#allocation3], %s502
        // Predicated region
        $region77: #{tpu_custom_call.1} parent=75 // pred_check
          %p504 = pneg %p59
        $region78: #{tpu_custom_call.1} parent=75 // pred_check_branch
          %506 = sbr.rel (%p504) target = $region80
        $region79: #{tpu_custom_call.1} parent=75 // pred_region
          %507 = dma.done %s500, 256
        $region80: #{tpu_custom_call.1} parent=75 // pred_fallthru
          _
        %s508 = sand.u32 %s38, 1
        %s509 = scalar_lea.sflag [#allocation7], %s508
        %s510 = sand.u32 %s72, 1
        %s511 = smul.addr %s510, 16
        %s512 = scalar_lea.vmem [#allocation6], %s511
        // Predicated region
        $region81: #{tpu_custom_call.1} parent=75 // pred_check
          %p513 = pneg %p85
        $region82: #{tpu_custom_call.1} parent=75 // pred_check_branch
          %515 = sbr.rel (%p513) target = $region84
        $region83: #{tpu_custom_call.1} parent=75 // pred_region
          %516 = dma.done %s509, 256
        $region84: #{tpu_custom_call.1} parent=75 // pred_fallthru
          _
        // Predicated region
        $region85: #{tpu_custom_call.1} parent=75 // pred_check
          %p517 = pneg %p106
        $region86: #{tpu_custom_call.1} parent=75 // pred_check_branch
          %519 = sbr.rel (%p517) target = $region88
        $region87: #{tpu_custom_call.1} parent=75 // pred_region
          %520 = dma.done [#allocation7], 128
        $region88: #{tpu_custom_call.1} parent=75 // pred_fallthru
          _
        // Predicated region
        $region89: #{tpu_custom_call.1} parent=75 // pred_check
          %p521 = pneg %p148
        $region90: #{tpu_custom_call.1} parent=75 // pred_check_branch
          %523 = sbr.rel (%p521) target = $region92
        $region91: #{tpu_custom_call.1} parent=75 // pred_region
          %524 = dma.done [#allocation10], 128
        $region92: #{tpu_custom_call.1} parent=75 // pred_fallthru
          _
        // Predicated region
        $region93: #{tpu_custom_call.1} parent=75 // pred_check
          %p525 = pneg %p211
        $region94: #{tpu_custom_call.1} parent=75 // pred_check_branch
          %527 = sbr.rel (%p525) target = $region96
        $region95: #{tpu_custom_call.1} parent=75 // pred_region
          %528 = dma.done [#allocation10], 512
        $region96: #{tpu_custom_call.1} parent=75 // pred_fallthru
          _
        // Predicated region
        $region97: #{tpu_custom_call.1} parent=75 // pred_check
          %p529 = pneg %p295
        $region98: #{tpu_custom_call.1} parent=75 // pred_check_branch
          %531 = sbr.rel (%p529) target = $region100
        $region99: #{tpu_custom_call.1} parent=75 // pred_region
          %532 = dma.done [#allocation13], 512
        $region100: #{tpu_custom_call.1} parent=75 // pred_fallthru
          _
        %s533 = sand.u32 %s46, 1
        %s534 = scalar_lea.sflag [#allocation4], %s533
        %s535 = sand.u32 %s46, 1
        %s536 = smul.addr %s535, 16
        %s537 = scalar_lea.vmem [#allocation3], %s536
        %p538 = pneg %p59
        %p539 = pneg %p56
        %s540 = sand.u32 %s38, 1
        %s541 = scalar_lea.sflag [#allocation7], %s540
        %s542 = sand.u32 %s72, 1
        %s543 = smul.addr %s542, 16
        %s544 = scalar_lea.vmem [#allocation6], %s543
        %p545 = pneg %p85
        %p546 = pneg %p82
        %p547 = pneg %p106
        %p548 = pneg %p103
        %p549 = pneg %p127
        %p550 = pneg %p124
        %p551 = pneg %p148
        %p552 = pneg %p145
        %p553 = pneg %p169
        %p554 = pneg %p166
        %p555 = pneg %p190
        %p556 = pneg %p187
        %p557 = pneg %p211
        %p558 = pneg %p208
        %p559 = pneg %p232
        %p560 = pneg %p229
        %p561 = pneg %p253
        %p562 = pneg %p250
        %p563 = pneg %p274
        %p564 = pneg %p271
        %p565 = pneg %p295
        %p566 = pneg %p292
        %p567 = pneg %p316
        %p568 = pneg %p313
        %p569 = pneg %p337
        %p570 = pneg %p334
        %p571 = pneg %p363
        %p572 = pneg %p360
        %s573 = sand.u32 %s350, 1
        %s574 = scalar_lea.sflag [#allocation5], %s573
        %s575 = sand.u32 %s350, 1
        %s576 = smul.addr %s575, 16
        %s577 = scalar_lea.vmem [#allocation14], %s576
        %v578 = vld [vmem:[%s503] sm:$0xff]
        %v579 = vld [vmem:[%s503 + $0x8] sm:$0xff]
        %v580 = vld [vmem:[%s512] sm:$0xff]
        %v581 = vld [vmem:[%s512 + $0x8] sm:$0xff]
        %582 = vrot.lane.b32.xlu0 %v578, 68
        %v583 = vpop.permute.xlu0 %582
        %584 = vrot.lane.b32.xlu0 %v579, 68
        %v585 = vpop.permute.xlu0 %584
        %v586 = vlaneseq
        %v587 = vand.u32 %v586, 127
        %vm588 = vcmp.lt.s32.totalorder %v587, 68
        %v589 = vsel %vm588, %v583, %v585
        %v590 = vsel %vm588, %v585, %v583
        %v591 = vld [vmem:[#allocation8] sm:$0xff]
        %v592 = vld [vmem:[%s3] ss:$8 sm:$0x3]
        %594 = vset.pattern.permute.xlu0 0
        %595 = vperm.xlu0 %594, %v591
        %v596 = vpop.permute.xlu0 %595
        %v599 = vlaneseq
        %v600 = vshrl.u32 %v599, 7
        %v601 = vsub.s32 0, %v600
        %v602 = vrot.slane %v592, %v601
        %v603 = vlaneseq
        %v604 = vshrl.u32 %v603, 7
        %v605 = vsub.s32 1, %v604
        %v606 = vrot.slane %v592, %v605
        %v609 = vmul.f32 %v596, %v602
        %v610 = vmul.f32 %v596, %v606
        %v611 = vmul.f32 %v590, %v609
        %v612 = vmul.f32 %v589, %v610
        %v613 = vadd.f32 %v611, 0.0
        %v614 = vadd.f32 %v612, 0.0
        %615 = vrot.lane.b32.xlu0 %v578, 64
        %v616 = vpop.permute.xlu0 %615
        %617 = vrot.lane.b32.xlu0 %v579, 64
        %v618 = vpop.permute.xlu0 %617
        %vm619 = vcmp.lt.s32.totalorder %v587, 64
        %v620 = vsel %vm619, %v616, %v618
        %v621 = vsel %vm619, %v618, %v616
        %s622 = scalar_lea.vmem %s3, 1
        %v623 = vld [vmem:[%s622] ss:$8 sm:$0x3]
        %624 = vset.pattern.permute.xlu0 1
        %625 = vperm.xlu0 %624, %v591
        %v626 = vpop.permute.xlu0 %625
        %v629 = vlaneseq
        %v630 = vshrl.u32 %v629, 7
        %v631 = vsub.s32 0, %v630
        %v632 = vrot.slane %v623, %v631
        %v633 = vlaneseq
        %v634 = vshrl.u32 %v633, 7
        %v635 = vsub.s32 1, %v634
        %v636 = vrot.slane %v623, %v635
        %v639 = vmul.f32 %v626, %v632
        %v640 = vmul.f32 %v626, %v636
        %v641 = vmul.f32 %v621, %v639
        %v642 = vmul.f32 %v620, %v640
        %v643 = vadd.f32 %v613, %v641
        %v644 = vadd.f32 %v614, %v642
        %645 = vrot.lane.b32.xlu0 %v578, 60
        %v646 = vpop.permute.xlu0 %645
        %647 = vrot.lane.b32.xlu0 %v579, 60
        %v648 = vpop.permute.xlu0 %647
        %vm649 = vcmp.lt.s32.totalorder %v587, 60
        %v650 = vsel %vm649, %v646, %v648
        %v651 = vsel %vm649, %v648, %v646
        %s652 = scalar_lea.vmem %s3, 2
        %v653 = vld [vmem:[%s652] ss:$8 sm:$0x3]
        %654 = vset.pattern.permute.xlu0 2
        %655 = vperm.xlu0 %654, %v591
        %v656 = vpop.permute.xlu0 %655
        %v659 = vlaneseq
        %v660 = vshrl.u32 %v659, 7
        %v661 = vsub.s32 0, %v660
        %v662 = vrot.slane %v653, %v661
        %v663 = vlaneseq
        %v664 = vshrl.u32 %v663, 7
        %v665 = vsub.s32 1, %v664
        %v666 = vrot.slane %v653, %v665
        %v669 = vmul.f32 %v656, %v662
        %v670 = vmul.f32 %v656, %v666
        %v671 = vmul.f32 %v651, %v669
        %v672 = vmul.f32 %v650, %v670
        %v673 = vadd.f32 %v643, %v671
        %v674 = vadd.f32 %v644, %v672
        %675 = vrot.lane.b32.xlu0 %v578, 4
        %v676 = vpop.permute.xlu0 %675
        %677 = vrot.lane.b32.xlu0 %v579, 4
        %v678 = vpop.permute.xlu0 %677
        %vm679 = vcmp.lt.s32.totalorder %v587, 4
        %v680 = vsel %vm679, %v676, %v678
        %v681 = vsel %vm679, %v678, %v676
        %s682 = scalar_lea.vmem %s3, 3
        %v683 = vld [vmem:[%s682] ss:$8 sm:$0x3]
        %684 = vset.pattern.permute.xlu0 3
        %685 = vperm.xlu0 %684, %v591
        %v686 = vpop.permute.xlu0 %685
        %v689 = vlaneseq
        %v690 = vshrl.u32 %v689, 7
        %v691 = vsub.s32 0, %v690
        %v692 = vrot.slane %v683, %v691
        %v693 = vlaneseq
        %v694 = vshrl.u32 %v693, 7
        %v695 = vsub.s32 1, %v694
        %v696 = vrot.slane %v683, %v695
        %v699 = vmul.f32 %v686, %v692
        %v700 = vmul.f32 %v686, %v696
        %v701 = vmul.f32 %v681, %v699
        %v702 = vmul.f32 %v680, %v700
        %v703 = vadd.f32 %v673, %v701
        %v704 = vadd.f32 %v674, %v702
        %s705 = scalar_lea.vmem %s3, 4
        %v706 = vld [vmem:[%s705] ss:$8 sm:$0x3]
        %707 = vset.pattern.permute.xlu0 4
        %708 = vperm.xlu0 %707, %v591
        %v709 = vpop.permute.xlu0 %708
        %v712 = vlaneseq
        %v713 = vshrl.u32 %v712, 7
        %v714 = vsub.s32 0, %v713
        %v715 = vrot.slane %v706, %v714
        %v716 = vlaneseq
        %v717 = vshrl.u32 %v716, 7
        %v718 = vsub.s32 1, %v717
        %v719 = vrot.slane %v706, %v718
        %v722 = vmul.f32 %v709, %v715
        %v723 = vmul.f32 %v709, %v719
        %v724 = vmul.f32 %v578, %v722
        %v725 = vmul.f32 %v579, %v723
        %v726 = vadd.f32 %v703, %v724
        %v727 = vadd.f32 %v704, %v725
        %728 = vrot.lane.b32.xlu0 %v578, 124
        %v729 = vpop.permute.xlu0 %728
        %730 = vrot.lane.b32.xlu0 %v579, 124
        %v731 = vpop.permute.xlu0 %730
        %vm732 = vcmp.lt.s32.totalorder %v587, 124
        %v733 = vsel %vm732, %v729, %v731
        %v734 = vsel %vm732, %v731, %v729
        %s735 = scalar_lea.vmem %s3, 5
        %v736 = vld [vmem:[%s735] ss:$8 sm:$0x3]
        %737 = vset.pattern.permute.xlu0 5
        %738 = vperm.xlu0 %737, %v591
        %v739 = vpop.permute.xlu0 %738
        %v742 = vlaneseq
        %v743 = vshrl.u32 %v742, 7
        %v744 = vsub.s32 0, %v743
        %v745 = vrot.slane %v736, %v744
        %v746 = vlaneseq
        %v747 = vshrl.u32 %v746, 7
        %v748 = vsub.s32 1, %v747
        %v749 = vrot.slane %v736, %v748
        %v752 = vmul.f32 %v739, %v745
        %v753 = vmul.f32 %v739, %v749
        %v754 = vmul.f32 %v733, %v752
        %v755 = vmul.f32 %v734, %v753
        %v756 = vadd.f32 %v726, %v754
        %v757 = vadd.f32 %v727, %v755
        %s758 = scalar_lea.vmem %s3, 6
        %v759 = vld [vmem:[%s758] ss:$8 sm:$0x3]
        %760 = vset.pattern.permute.xlu0 6
        %761 = vperm.xlu0 %760, %v591
        %v762 = vpop.permute.xlu0 %761
        %v765 = vlaneseq
        %v766 = vshrl.u32 %v765, 7
        %v767 = vsub.s32 0, %v766
        %v768 = vrot.slane %v759, %v767
        %v769 = vlaneseq
        %v770 = vshrl.u32 %v769, 7
        %v771 = vsub.s32 1, %v770
        %v772 = vrot.slane %v759, %v771
        %v775 = vmul.f32 %v762, %v768
        %v776 = vmul.f32 %v762, %v772
        %v777 = vmul.f32 %v589, %v775
        %v778 = vmul.f32 %v590, %v776
        %v779 = vadd.f32 %v756, %v777
        %v780 = vadd.f32 %v757, %v778
        %s781 = scalar_lea.vmem %s3, 7
        %v782 = vld [vmem:[%s781] ss:$8 sm:$0x3]
        %783 = vset.pattern.permute.xlu0 7
        %784 = vperm.xlu0 %783, %v591
        %v785 = vpop.permute.xlu0 %784
        %v788 = vlaneseq
        %v789 = vshrl.u32 %v788, 7
        %v790 = vsub.s32 0, %v789
        %v791 = vrot.slane %v782, %v790
        %v792 = vlaneseq
        %v793 = vshrl.u32 %v792, 7
        %v794 = vsub.s32 1, %v793
        %v795 = vrot.slane %v782, %v794
        %v798 = vmul.f32 %v785, %v791
        %v799 = vmul.f32 %v785, %v795
        %v800 = vmul.f32 %v620, %v798
        %v801 = vmul.f32 %v621, %v799
        %v802 = vadd.f32 %v779, %v800
        %v803 = vadd.f32 %v780, %v801
        %s804 = scalar_lea.vmem %s3, 16
        %v805 = vld [vmem:[%s804] ss:$8 sm:$0x3]
        %806 = vset.pattern.permute.xlu0 8
        %807 = vperm.xlu0 %806, %v591
        %v808 = vpop.permute.xlu0 %807
        %v811 = vlaneseq
        %v812 = vshrl.u32 %v811, 7
        %v813 = vsub.s32 0, %v812
        %v814 = vrot.slane %v805, %v813
        %v815 = vlaneseq
        %v816 = vshrl.u32 %v815, 7
        %v817 = vsub.s32 1, %v816
        %v818 = vrot.slane %v805, %v817
        %v821 = vmul.f32 %v808, %v814
        %v822 = vmul.f32 %v808, %v818
        %v823 = vmul.f32 %v650, %v821
        %v824 = vmul.f32 %v651, %v822
        %v825 = vadd.f32 %v802, %v823
        %v826 = vadd.f32 %v803, %v824
        %v827 = vld [vmem:[#allocation9] sm:$0xff]
        %v828 = vld [vmem:[%s5] sm:$0xff]
        %830 = vset.pattern.permute.xlu0 0
        %831 = vperm.xlu0 %830, %v828
        %v832 = vpop.permute.xlu0 %831
        %vm834 = vcmask 64512
        %v836 = vsel %vm834, %v827, 0
        %838 = vmatprep.subr.mxu0 %v826
        %839 = vmatpush1.msra.mxu0 %v825
        %840 = vmatprep.subr.mxu0 0.0
        %841 = vmatpush1.msra.mxu0 0.0
        %842 = vmatprep.subr.mxu0 0.0
        %843 = vmatpush1.msra.mxu0 0.0
        %844 = vmatprep.subr.mxu0 0.0
        %845 = vmatpush1.msra.mxu0 0.0
        %846 = vmatprep.subr.mxu0 0.0
        %847 = vmatpush1.msra.mxu0 0.0
        %848 = vmatprep.subr.mxu0 0.0
        %849 = vmatpush1.msra.mxu0 0.0
        %850 = vmatprep.subr.mxu0 0.0
        %851 = vmatpush1.msra.mxu0 0.0
        %852 = vmatprep.subr.mxu0 0.0
        %853 = vmatpush1.msra.mxu0 0.0
        %854 = vmatprep.subr.mxu0 0.0
        %855 = vmatpush1.msra.mxu0 0.0
        %856 = vmatprep.subr.mxu0 0.0
        %857 = vmatpush1.msra.mxu0 0.0
        %858 = vmatprep.subr.mxu0 0.0
        %859 = vmatpush1.msra.mxu0 0.0
        %860 = vmatprep.subr.mxu0 0.0
        %861 = vmatpush1.msra.mxu0 0.0
        %862 = vmatprep.subr.mxu0 0.0
        %863 = vmatpush1.msra.mxu0 0.0
        %864 = vmatprep.subr.mxu0 0.0
        %865 = vmatpush1.msra.mxu0 0.0
        %866 = vmatprep.subr.mxu0 0.0
        %867 = vmatpush1.msra.mxu0 0.0
        %868 = vmatprep.subr.mxu0 0.0
        %869 = vmatpush1.msra.mxu0 0.0
        %870 = vmatprep.subr.mxu0 0.0
        %871 = vmatpush1.msra.mxu0 0.0
        %872 = vmatprep.subr.mxu0 0.0
        %873 = vmatpush1.msra.mxu0 0.0
        %874 = vmatprep.subr.mxu0 0.0
        %875 = vmatpush1.msra.mxu0 0.0
        %876 = vmatprep.subr.mxu0 0.0
        %877 = vmatpush1.msra.mxu0 0.0
        %878 = vmatprep.subr.mxu0 0.0
        %879 = vmatpush1.msra.mxu0 0.0
        %880 = vmatprep.subr.mxu0 0.0
        %881 = vmatpush1.msra.mxu0 0.0
        %882 = vmatprep.subr.mxu0 0.0
        %883 = vmatpush1.msra.mxu0 0.0
        %884 = vmatprep.subr.mxu0 0.0
        %885 = vmatpush1.msra.mxu0 0.0
        %886 = vmatprep.subr.mxu0 0.0
        %887 = vmatpush1.msra.mxu0 0.0
        %888 = vmatprep.subr.mxu0 0.0
        %889 = vmatpush1.msra.mxu0 0.0
        %890 = vmatprep.subr.mxu0 0.0
        %891 = vmatpush1.msra.mxu0 0.0
        %892 = vmatprep.subr.mxu0 0.0
        %893 = vmatpush1.msra.mxu0 0.0
        %894 = vmatprep.subr.mxu0 0.0
        %895 = vmatpush1.msra.mxu0 0.0
        %896 = vmatprep.subr.mxu0 0.0
        %897 = vmatpush1.msra.mxu0 0.0
        %898 = vmatprep.subr.mxu0 0.0
        %899 = vmatpush1.msra.mxu0 0.0
        %900 = vmatprep.subr.mxu0 0.0
        %901 = vmatpush1.msra.mxu0 0.0
        %902 = vmatprep.mubr.f32.mxu0 0.0
        %903 = vmatmul.mubr.f32.gmra.mrb[0].mxu0 %v836
        %v904 = vpop.f32.mrb[0].mxu0
        %v905 = vadd.f32 %v832, %v904
        %v906 = vpop.f32.mrb[0].mxu0
        %v907 = vadd.f32 %v832, %v906
        %908 = vdwg.mxu0
        %909 = vrot.lane.b32.xlu0 %v580, 102
        %v910 = vpop.permute.xlu0 %909
        %911 = vrot.lane.b32.xlu0 %v581, 102
        %v912 = vpop.permute.xlu0 %911
        %vm913 = vcmp.lt.s32.totalorder %v587, 102
        %v914 = vsel %vm913, %v910, %v912
        %v915 = vsel %vm913, %v912, %v910
        %v916 = vld [vmem:[%s6] sm:$0xff]
        %v917 = vld [vmem:[#allocation11] ss:$8 sm:$0x3]
        %919 = vset.pattern.permute.xlu0 0
        %920 = vperm.xlu0 %919, %v916
        %v921 = vpop.permute.xlu0 %920
        %v924 = vlaneseq
        %v925 = vshrl.u32 %v924, 7
        %v926 = vsub.s32 0, %v925
        %v927 = vrot.slane %v917, %v926
        %v928 = vlaneseq
        %v929 = vshrl.u32 %v928, 7
        %v930 = vsub.s32 1, %v929
        %v931 = vrot.slane %v917, %v930
        %v934 = vmul.f32 %v921, %v927
        %v935 = vmul.f32 %v921, %v931
        %v936 = vmul.f32 %v915, %v934
        %v937 = vmul.f32 %v914, %v935
        %v938 = vadd.f32 %v936, 0.0
        %v939 = vadd.f32 %v937, 0.0
        %940 = vrot.lane.b32.xlu0 %v580, 96
        %v941 = vpop.permute.xlu0 %940
        %942 = vrot.lane.b32.xlu0 %v581, 96
        %v943 = vpop.permute.xlu0 %942
        %vm944 = vcmp.lt.s32.totalorder %v587, 96
        %v945 = vsel %vm944, %v941, %v943
        %v946 = vsel %vm944, %v943, %v941
        %s947 = scalar_lea.vmem [#allocation11], 1
        %v948 = vld [vmem:[%s947] ss:$8 sm:$0x3]
        %949 = vset.pattern.permute.xlu0 1
        %950 = vperm.xlu0 %949, %v916
        %v951 = vpop.permute.xlu0 %950
        %v954 = vlaneseq
        %v955 = vshrl.u32 %v954, 7
        %v956 = vsub.s32 0, %v955
        %v957 = vrot.slane %v948, %v956
        %v958 = vlaneseq
        %v959 = vshrl.u32 %v958, 7
        %v960 = vsub.s32 1, %v959
        %v961 = vrot.slane %v948, %v960
        %v964 = vmul.f32 %v951, %v957
        %v965 = vmul.f32 %v951, %v961
        %v966 = vmul.f32 %v946, %v964
        %v967 = vmul.f32 %v945, %v965
        %v968 = vadd.f32 %v938, %v966
        %v969 = vadd.f32 %v939, %v967
        %970 = vrot.lane.b32.xlu0 %v580, 90
        %v971 = vpop.permute.xlu0 %970
        %972 = vrot.lane.b32.xlu0 %v581, 90
        %v973 = vpop.permute.xlu0 %972
        %vm974 = vcmp.lt.s32.totalorder %v587, 90
        %v975 = vsel %vm974, %v971, %v973
        %v976 = vsel %vm974, %v973, %v971
        %s977 = scalar_lea.vmem [#allocation11], 2
        %v978 = vld [vmem:[%s977] ss:$8 sm:$0x3]
        %979 = vset.pattern.permute.xlu0 2
        %980 = vperm.xlu0 %979, %v916
        %v981 = vpop.permute.xlu0 %980
        %v984 = vlaneseq
        %v985 = vshrl.u32 %v984, 7
        %v986 = vsub.s32 0, %v985
        %v987 = vrot.slane %v978, %v986
        %v988 = vlaneseq
        %v989 = vshrl.u32 %v988, 7
        %v990 = vsub.s32 1, %v989
        %v991 = vrot.slane %v978, %v990
        %v994 = vmul.f32 %v981, %v987
        %v995 = vmul.f32 %v981, %v991
        %v996 = vmul.f32 %v976, %v994
        %v997 = vmul.f32 %v975, %v995
        %v998 = vadd.f32 %v968, %v996
        %v999 = vadd.f32 %v969, %v997
        %1000 = vrot.lane.b32.xlu0 %v580, 6
        %v1001 = vpop.permute.xlu0 %1000
        %1002 = vrot.lane.b32.xlu0 %v581, 6
        %v1003 = vpop.permute.xlu0 %1002
        %vm1004 = vcmp.lt.s32.totalorder %v587, 6
        %v1005 = vsel %vm1004, %v1001, %v1003
        %v1006 = vsel %vm1004, %v1003, %v1001
        %s1007 = scalar_lea.vmem [#allocation11], 3
        %v1008 = vld [vmem:[%s1007] ss:$8 sm:$0x3]
        %1009 = vset.pattern.permute.xlu0 3
        %1010 = vperm.xlu0 %1009, %v916
        %v1011 = vpop.permute.xlu0 %1010
        %v1014 = vlaneseq
        %v1015 = vshrl.u32 %v1014, 7
        %v1016 = vsub.s32 0, %v1015
        %v1017 = vrot.slane %v1008, %v1016
        %v1018 = vlaneseq
        %v1019 = vshrl.u32 %v1018, 7
        %v1020 = vsub.s32 1, %v1019
        %v1021 = vrot.slane %v1008, %v1020
        %v1024 = vmul.f32 %v1011, %v1017
        %v1025 = vmul.f32 %v1011, %v1021
        %v1026 = vmul.f32 %v1006, %v1024
        %v1027 = vmul.f32 %v1005, %v1025
        %v1028 = vadd.f32 %v998, %v1026
        %v1029 = vadd.f32 %v999, %v1027
        %s1030 = scalar_lea.vmem [#allocation11], 4
        %v1031 = vld [vmem:[%s1030] ss:$8 sm:$0x3]
        %1032 = vset.pattern.permute.xlu0 4
        %1033 = vperm.xlu0 %1032, %v916
        %v1034 = vpop.permute.xlu0 %1033
        %v1037 = vlaneseq
        %v1038 = vshrl.u32 %v1037, 7
        %v1039 = vsub.s32 0, %v1038
        %v1040 = vrot.slane %v1031, %v1039
        %v1041 = vlaneseq
        %v1042 = vshrl.u32 %v1041, 7
        %v1043 = vsub.s32 1, %v1042
        %v1044 = vrot.slane %v1031, %v1043
        %v1047 = vmul.f32 %v1034, %v1040
        %v1048 = vmul.f32 %v1034, %v1044
        %v1049 = vmul.f32 %v580, %v1047
        %v1050 = vmul.f32 %v581, %v1048
        %v1051 = vadd.f32 %v1028, %v1049
        %v1052 = vadd.f32 %v1029, %v1050
        %1053 = vrot.lane.b32.xlu0 %v580, 122
        %v1054 = vpop.permute.xlu0 %1053
        %1055 = vrot.lane.b32.xlu0 %v581, 122
        %v1056 = vpop.permute.xlu0 %1055
        %vm1057 = vcmp.lt.s32.totalorder %v587, 122
        %v1058 = vsel %vm1057, %v1054, %v1056
        %v1059 = vsel %vm1057, %v1056, %v1054
        %s1060 = scalar_lea.vmem [#allocation11], 5
        %v1061 = vld [vmem:[%s1060] ss:$8 sm:$0x3]
        %1062 = vset.pattern.permute.xlu0 5
        %1063 = vperm.xlu0 %1062, %v916
        %v1064 = vpop.permute.xlu0 %1063
        %v1067 = vlaneseq
        %v1068 = vshrl.u32 %v1067, 7
        %v1069 = vsub.s32 0, %v1068
        %v1070 = vrot.slane %v1061, %v1069
        %v1071 = vlaneseq
        %v1072 = vshrl.u32 %v1071, 7
        %v1073 = vsub.s32 1, %v1072
        %v1074 = vrot.slane %v1061, %v1073
        %v1077 = vmul.f32 %v1064, %v1070
        %v1078 = vmul.f32 %v1064, %v1074
        %v1079 = vmul.f32 %v1058, %v1077
        %v1080 = vmul.f32 %v1059, %v1078
        %v1081 = vadd.f32 %v1051, %v1079
        %v1082 = vadd.f32 %v1052, %v1080
        %1083 = vrot.lane.b32.xlu0 %v580, 38
        %v1084 = vpop.permute.xlu0 %1083
        %1085 = vrot.lane.b32.xlu0 %v581, 38
        %v1086 = vpop.permute.xlu0 %1085
        %vm1087 = vcmp.lt.s32.totalorder %v587, 38
        %v1088 = vsel %vm1087, %v1084, %v1086
        %v1089 = vsel %vm1087, %v1086, %v1084
        %s1090 = scalar_lea.vmem [#allocation11], 6
        %v1091 = vld [vmem:[%s1090] ss:$8 sm:$0x3]
        %1092 = vset.pattern.permute.xlu0 6
        %1093 = vperm.xlu0 %1092, %v916
        %v1094 = vpop.permute.xlu0 %1093
        %v1097 = vlaneseq
        %v1098 = vshrl.u32 %v1097, 7
        %v1099 = vsub.s32 0, %v1098
        %v1100 = vrot.slane %v1091, %v1099
        %v1101 = vlaneseq
        %v1102 = vshrl.u32 %v1101, 7
        %v1103 = vsub.s32 1, %v1102
        %v1104 = vrot.slane %v1091, %v1103
        %v1107 = vmul.f32 %v1094, %v1100
        %v1108 = vmul.f32 %v1094, %v1104
        %v1109 = vmul.f32 %v1088, %v1107
        %v1110 = vmul.f32 %v1089, %v1108
        %v1111 = vadd.f32 %v1081, %v1109
        %v1112 = vadd.f32 %v1082, %v1110
        %1113 = vrot.lane.b32.xlu0 %v580, 32
        %v1114 = vpop.permute.xlu0 %1113
        %1115 = vrot.lane.b32.xlu0 %v581, 32
        %v1116 = vpop.permute.xlu0 %1115
        %vm1117 = vcmp.lt.s32.totalorder %v587, 32
        %v1118 = vsel %vm1117, %v1114, %v1116
        %v1119 = vsel %vm1117, %v1116, %v1114
        %s1120 = scalar_lea.vmem [#allocation11], 7
        %v1121 = vld [vmem:[%s1120] ss:$8 sm:$0x3]
        %1122 = vset.pattern.permute.xlu0 7
        %1123 = vperm.xlu0 %1122, %v916
        %v1124 = vpop.permute.xlu0 %1123
        %v1127 = vlaneseq
        %v1128 = vshrl.u32 %v1127, 7
        %v1129 = vsub.s32 0, %v1128
        %v1130 = vrot.slane %v1121, %v1129
        %v1131 = vlaneseq
        %v1132 = vshrl.u32 %v1131, 7
        %v1133 = vsub.s32 1, %v1132
        %v1134 = vrot.slane %v1121, %v1133
        %v1137 = vmul.f32 %v1124, %v1130
        %v1138 = vmul.f32 %v1124, %v1134
        %v1139 = vmul.f32 %v1118, %v1137
        %v1140 = vmul.f32 %v1119, %v1138
        %v1141 = vadd.f32 %v1111, %v1139
        %v1142 = vadd.f32 %v1112, %v1140
        %1143 = vrot.lane.b32.xlu0 %v580, 26
        %v1144 = vpop.permute.xlu0 %1143
        %1145 = vrot.lane.b32.xlu0 %v581, 26
        %v1146 = vpop.permute.xlu0 %1145
        %vm1147 = vcmp.lt.s32.totalorder %v587, 26
        %v1148 = vsel %vm1147, %v1144, %v1146
        %v1149 = vsel %vm1147, %v1146, %v1144
        %s1150 = scalar_lea.vmem [#allocation11], 16
        %v1151 = vld [vmem:[%s1150] ss:$8 sm:$0x3]
        %1152 = vset.pattern.permute.xlu0 8
        %1153 = vperm.xlu0 %1152, %v916
        %v1154 = vpop.permute.xlu0 %1153
        %v1157 = vlaneseq
        %v1158 = vshrl.u32 %v1157, 7
        %v1159 = vsub.s32 0, %v1158
        %v1160 = vrot.slane %v1151, %v1159
        %v1161 = vlaneseq
        %v1162 = vshrl.u32 %v1161, 7
        %v1163 = vsub.s32 1, %v1162
        %v1164 = vrot.slane %v1151, %v1163
        %v1167 = vmul.f32 %v1154, %v1160
        %v1168 = vmul.f32 %v1154, %v1164
        %v1169 = vmul.f32 %v1148, %v1167
        %v1170 = vmul.f32 %v1149, %v1168
        %v1171 = vadd.f32 %v1141, %v1169
        %v1172 = vadd.f32 %v1142, %v1170
        %v1173 = vld [vmem:[%s8] sm:$0xff]
        %v1174 = vld [vmem:[%s9] sm:$0xff]
        %1176 = vset.pattern.permute.xlu0 0
        %1177 = vperm.xlu0 %1176, %v1174
        %v1178 = vpop.permute.xlu0 %1177
        %v1181 = vsel %vm834, %v1173, 0
        %1183 = vmatprep.subr.mxu0 %v1172
        %1184 = vmatpush1.msra.mxu0 %v1171
        %1185 = vmatprep.subr.mxu0 0.0
        %1186 = vmatpush1.msra.mxu0 0.0
        %1187 = vmatprep.subr.mxu0 0.0
        %1188 = vmatpush1.msra.mxu0 0.0
        %1189 = vmatprep.subr.mxu0 0.0
        %1190 = vmatpush1.msra.mxu0 0.0
        %1191 = vmatprep.subr.mxu0 0.0
        %1192 = vmatpush1.msra.mxu0 0.0
        %1193 = vmatprep.subr.mxu0 0.0
        %1194 = vmatpush1.msra.mxu0 0.0
        %1195 = vmatprep.subr.mxu0 0.0
        %1196 = vmatpush1.msra.mxu0 0.0
        %1197 = vmatprep.subr.mxu0 0.0
        %1198 = vmatpush1.msra.mxu0 0.0
        %1199 = vmatprep.subr.mxu0 0.0
        %1200 = vmatpush1.msra.mxu0 0.0
        %1201 = vmatprep.subr.mxu0 0.0
        %1202 = vmatpush1.msra.mxu0 0.0
        %1203 = vmatprep.subr.mxu0 0.0
        %1204 = vmatpush1.msra.mxu0 0.0
        %1205 = vmatprep.subr.mxu0 0.0
        %1206 = vmatpush1.msra.mxu0 0.0
        %1207 = vmatprep.subr.mxu0 0.0
        %1208 = vmatpush1.msra.mxu0 0.0
        %1209 = vmatprep.subr.mxu0 0.0
        %1210 = vmatpush1.msra.mxu0 0.0
        %1211 = vmatprep.subr.mxu0 0.0
        %1212 = vmatpush1.msra.mxu0 0.0
        %1213 = vmatprep.subr.mxu0 0.0
        %1214 = vmatpush1.msra.mxu0 0.0
        %1215 = vmatprep.subr.mxu0 0.0
        %1216 = vmatpush1.msra.mxu0 0.0
        %1217 = vmatprep.subr.mxu0 0.0
        %1218 = vmatpush1.msra.mxu0 0.0
        %1219 = vmatprep.subr.mxu0 0.0
        %1220 = vmatpush1.msra.mxu0 0.0
        %1221 = vmatprep.subr.mxu0 0.0
        %1222 = vmatpush1.msra.mxu0 0.0
        %1223 = vmatprep.subr.mxu0 0.0
        %1224 = vmatpush1.msra.mxu0 0.0
        %1225 = vmatprep.subr.mxu0 0.0
        %1226 = vmatpush1.msra.mxu0 0.0
        %1227 = vmatprep.subr.mxu0 0.0
        %1228 = vmatpush1.msra.mxu0 0.0
        %1229 = vmatprep.subr.mxu0 0.0
        %1230 = vmatpush1.msra.mxu0 0.0
        %1231 = vmatprep.subr.mxu0 0.0
        %1232 = vmatpush1.msra.mxu0 0.0
        %1233 = vmatprep.subr.mxu0 0.0
        %1234 = vmatpush1.msra.mxu0 0.0
        %1235 = vmatprep.subr.mxu0 0.0
        %1236 = vmatpush1.msra.mxu0 0.0
        %1237 = vmatprep.subr.mxu0 0.0
        %1238 = vmatpush1.msra.mxu0 0.0
        %1239 = vmatprep.subr.mxu0 0.0
        %1240 = vmatpush1.msra.mxu0 0.0
        %1241 = vmatprep.subr.mxu0 0.0
        %1242 = vmatpush1.msra.mxu0 0.0
        %1243 = vmatprep.subr.mxu0 0.0
        %1244 = vmatpush1.msra.mxu0 0.0
        %1245 = vmatprep.subr.mxu0 0.0
        %1246 = vmatpush1.msra.mxu0 0.0
        %1247 = vmatprep.mubr.f32.mxu0 0.0
        %1248 = vmatmul.mubr.f32.gmra.mrb[0].mxu0 %v1181
        %v1249 = vpop.f32.mrb[0].mxu0
        %v1250 = vadd.f32 %v1178, %v1249
        %v1251 = vpop.f32.mrb[0].mxu0
        %v1252 = vadd.f32 %v1178, %v1251
        %1253 = vdwg.mxu0
        %v1254 = vadd.f32 %v905, %v1250
        %v1255 = vadd.f32 %v907, %v1252
        %v1256 = vmax.f32 %v1254, 0.0
        %v1257 = vmax.f32 %v1255, 0.0
        %1258 = vrot.lane.b32.xlu0 %v1256, 8
        %v1259 = vpop.permute.xlu0 %1258
        %1260 = vrot.lane.b32.xlu0 %v1257, 8
        %v1261 = vpop.permute.xlu0 %1260
        %vm1262 = vcmp.lt.s32.totalorder %v587, 8
        %v1263 = vsel %vm1262, %v1259, %v1261
        %v1264 = vsel %vm1262, %v1261, %v1259
        %v1265 = vld [vmem:[%s10] sm:$0xff]
        %v1266 = vld [vmem:[#allocation12] ss:$8 sm:$0x3]
        %1268 = vset.pattern.permute.xlu0 0
        %1269 = vperm.xlu0 %1268, %v1265
        %v1270 = vpop.permute.xlu0 %1269
        %v1273 = vlaneseq
        %v1274 = vshrl.u32 %v1273, 7
        %v1275 = vsub.s32 0, %v1274
        %v1276 = vrot.slane %v1266, %v1275
        %v1277 = vlaneseq
        %v1278 = vshrl.u32 %v1277, 7
        %v1279 = vsub.s32 1, %v1278
        %v1280 = vrot.slane %v1266, %v1279
        %v1283 = vmul.f32 %v1270, %v1276
        %v1284 = vmul.f32 %v1270, %v1280
        %v1285 = vmul.f32 %v1263, %v1283
        %v1286 = vmul.f32 %v1264, %v1284
        %v1287 = vadd.f32 %v1285, 0.0
        %v1288 = vadd.f32 %v1286, 0.0
        %s1289 = scalar_lea.vmem [#allocation12], 1
        %v1290 = vld [vmem:[%s1289] ss:$8 sm:$0x3]
        %1291 = vset.pattern.permute.xlu0 1
        %1292 = vperm.xlu0 %1291, %v1265
        %v1293 = vpop.permute.xlu0 %1292
        %v1296 = vlaneseq
        %v1297 = vshrl.u32 %v1296, 7
        %v1298 = vsub.s32 0, %v1297
        %v1299 = vrot.slane %v1290, %v1298
        %v1300 = vlaneseq
        %v1301 = vshrl.u32 %v1300, 7
        %v1302 = vsub.s32 1, %v1301
        %v1303 = vrot.slane %v1290, %v1302
        %v1306 = vmul.f32 %v1293, %v1299
        %v1307 = vmul.f32 %v1293, %v1303
        %v1308 = vmul.f32 %v1257, %v1306
        %v1309 = vmul.f32 %v1256, %v1307
        %v1310 = vadd.f32 %v1287, %v1308
        %v1311 = vadd.f32 %v1288, %v1309
        %1312 = vrot.lane.b32.xlu0 %v1256, 120
        %v1313 = vpop.permute.xlu0 %1312
        %1314 = vrot.lane.b32.xlu0 %v1257, 120
        %v1315 = vpop.permute.xlu0 %1314
        %vm1316 = vcmp.lt.s32.totalorder %v587, 120
        %v1317 = vsel %vm1316, %v1313, %v1315
        %v1318 = vsel %vm1316, %v1315, %v1313
        %s1319 = scalar_lea.vmem [#allocation12], 2
        %v1320 = vld [vmem:[%s1319] ss:$8 sm:$0x3]
        %1321 = vset.pattern.permute.xlu0 2
        %1322 = vperm.xlu0 %1321, %v1265
        %v1323 = vpop.permute.xlu0 %1322
        %v1326 = vlaneseq
        %v1327 = vshrl.u32 %v1326, 7
        %v1328 = vsub.s32 0, %v1327
        %v1329 = vrot.slane %v1320, %v1328
        %v1330 = vlaneseq
        %v1331 = vshrl.u32 %v1330, 7
        %v1332 = vsub.s32 1, %v1331
        %v1333 = vrot.slane %v1320, %v1332
        %v1336 = vmul.f32 %v1323, %v1329
        %v1337 = vmul.f32 %v1323, %v1333
        %v1338 = vmul.f32 %v1318, %v1336
        %v1339 = vmul.f32 %v1317, %v1337
        %v1340 = vadd.f32 %v1310, %v1338
        %v1341 = vadd.f32 %v1311, %v1339
        %s1342 = scalar_lea.vmem [#allocation12], 3
        %v1343 = vld [vmem:[%s1342] ss:$8 sm:$0x3]
        %1344 = vset.pattern.permute.xlu0 3
        %1345 = vperm.xlu0 %1344, %v1265
        %v1346 = vpop.permute.xlu0 %1345
        %v1349 = vlaneseq
        %v1350 = vshrl.u32 %v1349, 7
        %v1351 = vsub.s32 0, %v1350
        %v1352 = vrot.slane %v1343, %v1351
        %v1353 = vlaneseq
        %v1354 = vshrl.u32 %v1353, 7
        %v1355 = vsub.s32 1, %v1354
        %v1356 = vrot.slane %v1343, %v1355
        %v1359 = vmul.f32 %v1346, %v1352
        %v1360 = vmul.f32 %v1346, %v1356
        %v1361 = vmul.f32 %v1264, %v1359
        %v1362 = vmul.f32 %v1263, %v1360
        %v1363 = vadd.f32 %v1340, %v1361
        %v1364 = vadd.f32 %v1341, %v1362
        %s1365 = scalar_lea.vmem [#allocation12], 4
        %v1366 = vld [vmem:[%s1365] ss:$8 sm:$0x3]
        %1367 = vset.pattern.permute.xlu0 4
        %1368 = vperm.xlu0 %1367, %v1265
        %v1369 = vpop.permute.xlu0 %1368
        %v1372 = vlaneseq
        %v1373 = vshrl.u32 %v1372, 7
        %v1374 = vsub.s32 0, %v1373
        %v1375 = vrot.slane %v1366, %v1374
        %v1376 = vlaneseq
        %v1377 = vshrl.u32 %v1376, 7
        %v1378 = vsub.s32 1, %v1377
        %v1379 = vrot.slane %v1366, %v1378
        %v1382 = vmul.f32 %v1369, %v1375
        %v1383 = vmul.f32 %v1369, %v1379
        %v1384 = vmul.f32 %v1256, %v1382
        %v1385 = vmul.f32 %v1257, %v1383
        %v1386 = vadd.f32 %v1363, %v1384
        %v1387 = vadd.f32 %v1364, %v1385
        %s1388 = scalar_lea.vmem [#allocation12], 5
        %v1389 = vld [vmem:[%s1388] ss:$8 sm:$0x3]
        %1390 = vset.pattern.permute.xlu0 5
        %1391 = vperm.xlu0 %1390, %v1265
        %v1392 = vpop.permute.xlu0 %1391
        %v1395 = vlaneseq
        %v1396 = vshrl.u32 %v1395, 7
        %v1397 = vsub.s32 0, %v1396
        %v1398 = vrot.slane %v1389, %v1397
        %v1399 = vlaneseq
        %v1400 = vshrl.u32 %v1399, 7
        %v1401 = vsub.s32 1, %v1400
        %v1402 = vrot.slane %v1389, %v1401
        %v1405 = vmul.f32 %v1392, %v1398
        %v1406 = vmul.f32 %v1392, %v1402
        %v1407 = vmul.f32 %v1317, %v1405
        %v1408 = vmul.f32 %v1318, %v1406
        %v1409 = vadd.f32 %v1386, %v1407
        %v1410 = vadd.f32 %v1387, %v1408
        %s1411 = scalar_lea.vmem [#allocation12], 6
        %v1412 = vld [vmem:[%s1411] ss:$8 sm:$0x3]
        %1413 = vset.pattern.permute.xlu0 6
        %1414 = vperm.xlu0 %1413, %v1265
        %v1415 = vpop.permute.xlu0 %1414
        %v1418 = vlaneseq
        %v1419 = vshrl.u32 %v1418, 7
        %v1420 = vsub.s32 0, %v1419
        %v1421 = vrot.slane %v1412, %v1420
        %v1422 = vlaneseq
        %v1423 = vshrl.u32 %v1422, 7
        %v1424 = vsub.s32 1, %v1423
        %v1425 = vrot.slane %v1412, %v1424
        %v1428 = vmul.f32 %v1415, %v1421
        %v1429 = vmul.f32 %v1415, %v1425
        %v1430 = vmul.f32 %v1263, %v1428
        %v1431 = vmul.f32 %v1264, %v1429
        %v1432 = vadd.f32 %v1409, %v1430
        %v1433 = vadd.f32 %v1410, %v1431
        %s1434 = scalar_lea.vmem [#allocation12], 7
        %v1435 = vld [vmem:[%s1434] ss:$8 sm:$0x3]
        %1436 = vset.pattern.permute.xlu0 7
        %1437 = vperm.xlu0 %1436, %v1265
        %v1438 = vpop.permute.xlu0 %1437
        %v1441 = vlaneseq
        %v1442 = vshrl.u32 %v1441, 7
        %v1443 = vsub.s32 0, %v1442
        %v1444 = vrot.slane %v1435, %v1443
        %v1445 = vlaneseq
        %v1446 = vshrl.u32 %v1445, 7
        %v1447 = vsub.s32 1, %v1446
        %v1448 = vrot.slane %v1435, %v1447
        %v1451 = vmul.f32 %v1438, %v1444
        %v1452 = vmul.f32 %v1438, %v1448
        %v1453 = vmul.f32 %v1257, %v1451
        %v1454 = vmul.f32 %v1256, %v1452
        %v1455 = vadd.f32 %v1432, %v1453
        %v1456 = vadd.f32 %v1433, %v1454
        %s1457 = scalar_lea.vmem [#allocation12], 16
        %v1458 = vld [vmem:[%s1457] ss:$8 sm:$0x3]
        %1459 = vset.pattern.permute.xlu0 8
        %1460 = vperm.xlu0 %1459, %v1265
        %v1461 = vpop.permute.xlu0 %1460
        %v1464 = vlaneseq
        %v1465 = vshrl.u32 %v1464, 7
        %v1466 = vsub.s32 0, %v1465
        %v1467 = vrot.slane %v1458, %v1466
        %v1468 = vlaneseq
        %v1469 = vshrl.u32 %v1468, 7
        %v1470 = vsub.s32 1, %v1469
        %v1471 = vrot.slane %v1458, %v1470
        %v1474 = vmul.f32 %v1461, %v1467
        %v1475 = vmul.f32 %v1461, %v1471
        %v1476 = vmul.f32 %v1318, %v1474
        %v1477 = vmul.f32 %v1317, %v1475
        %v1478 = vadd.f32 %v1455, %v1476
        %v1479 = vadd.f32 %v1456, %v1477
        %v1480 = vld [vmem:[%s12] sm:$0x1]
        %v1481 = vld [vmem:[#allocation2] sm:$0x1]
        %1483 = vset.pattern.permute.xlu0 0
        %1484 = vperm.xlu0 %1483, %v1481
        %v1485 = vpop.permute.xlu0 %1484
        %v1487 = vlaneseq
        %v1488 = vshrl.u32 %v1487, 7
        %v1489 = vsub.s32 0, %v1488
        %v1490 = vrot.slane %v1485, %v1489
        %v1492 = vsel %vm834, %v1480, 0
        %1494 = vmatprep.subr.mxu0 %v1479
        %1495 = vmatpush1.msra.mxu0 %v1478
        %1496 = vmatprep.subr.mxu0 0.0
        %1497 = vmatpush1.msra.mxu0 0.0
        %1498 = vmatprep.subr.mxu0 0.0
        %1499 = vmatpush1.msra.mxu0 0.0
        %1500 = vmatprep.subr.mxu0 0.0
        %1501 = vmatpush1.msra.mxu0 0.0
        %1502 = vmatprep.subr.mxu0 0.0
        %1503 = vmatpush1.msra.mxu0 0.0
        %1504 = vmatprep.subr.mxu0 0.0
        %1505 = vmatpush1.msra.mxu0 0.0
        %1506 = vmatprep.subr.mxu0 0.0
        %1507 = vmatpush1.msra.mxu0 0.0
        %1508 = vmatprep.subr.mxu0 0.0
        %1509 = vmatpush1.msra.mxu0 0.0
        %1510 = vmatprep.subr.mxu0 0.0
        %1511 = vmatpush1.msra.mxu0 0.0
        %1512 = vmatprep.subr.mxu0 0.0
        %1513 = vmatpush1.msra.mxu0 0.0
        %1514 = vmatprep.subr.mxu0 0.0
        %1515 = vmatpush1.msra.mxu0 0.0
        %1516 = vmatprep.subr.mxu0 0.0
        %1517 = vmatpush1.msra.mxu0 0.0
        %1518 = vmatprep.subr.mxu0 0.0
        %1519 = vmatpush1.msra.mxu0 0.0
        %1520 = vmatprep.subr.mxu0 0.0
        %1521 = vmatpush1.msra.mxu0 0.0
        %1522 = vmatprep.subr.mxu0 0.0
        %1523 = vmatpush1.msra.mxu0 0.0
        %1524 = vmatprep.subr.mxu0 0.0
        %1525 = vmatpush1.msra.mxu0 0.0
        %1526 = vmatprep.subr.mxu0 0.0
        %1527 = vmatpush1.msra.mxu0 0.0
        %1528 = vmatprep.subr.mxu0 0.0
        %1529 = vmatpush1.msra.mxu0 0.0
        %1530 = vmatprep.subr.mxu0 0.0
        %1531 = vmatpush1.msra.mxu0 0.0
        %1532 = vmatprep.subr.mxu0 0.0
        %1533 = vmatpush1.msra.mxu0 0.0
        %1534 = vmatprep.subr.mxu0 0.0
        %1535 = vmatpush1.msra.mxu0 0.0
        %1536 = vmatprep.subr.mxu0 0.0
        %1537 = vmatpush1.msra.mxu0 0.0
        %1538 = vmatprep.subr.mxu0 0.0
        %1539 = vmatpush1.msra.mxu0 0.0
        %1540 = vmatprep.subr.mxu0 0.0
        %1541 = vmatpush1.msra.mxu0 0.0
        %1542 = vmatprep.subr.mxu0 0.0
        %1543 = vmatpush1.msra.mxu0 0.0
        %1544 = vmatprep.subr.mxu0 0.0
        %1545 = vmatpush1.msra.mxu0 0.0
        %1546 = vmatprep.subr.mxu0 0.0
        %1547 = vmatpush1.msra.mxu0 0.0
        %1548 = vmatprep.subr.mxu0 0.0
        %1549 = vmatpush1.msra.mxu0 0.0
        %1550 = vmatprep.subr.mxu0 0.0
        %1551 = vmatpush1.msra.mxu0 0.0
        %1552 = vmatprep.subr.mxu0 0.0
        %1553 = vmatpush1.msra.mxu0 0.0
        %1554 = vmatprep.subr.mxu0 0.0
        %1555 = vmatpush1.msra.mxu0 0.0
        %1556 = vmatprep.subr.mxu0 0.0
        %1557 = vmatpush1.msra.mxu0 0.0
        %1558 = vmatprep.mubr.f32.mxu0 0.0
        %1559 = vmatmul.mubr.f32.gmra.mrb[0].mxu0 %v1492
        %v1560 = vpop.f32.mrb[0].mxu0
        %v1561 = vadd.f32 %v1490, %v1560
        %v1562 = vpop.f32.mrb[0].mxu0
        %v1563 = vadd.f32 %v1490, %v1562
        %1564 = vdwg.mxu0
        %v1565 = vxor.u32 %v1561, 2147483648
        %v1566 = vxor.u32 %v1563, 2147483648
        %v1567 = vmul.f32 %v1565, 1.442695
        %v1568 = vpow.pop %v1567
        %v1569 = vmul.f32 %v1566, 1.442695
        %v1570 = vpow.pop %v1569
        %v1571 = vadd.f32 %v1568, 1.0
        %v1572 = vadd.f32 %v1570, 1.0
        %v1573 = vrcp.pop %v1571
        %v1574 = vmul.f32 1.0, %v1573
        %v1575 = vrcp.pop %v1572
        %v1576 = vmul.f32 1.0, %v1575
        %v1577 = vlaneseq
        %v1578 = vshrl.u32 %v1577, 7
        %v1579 = vsub.s32 0, %v1578
        %v1580 = vrot.slane %v1574, %v1579
        %v1581 = vlaneseq
        %v1582 = vshrl.u32 %v1581, 7
        %v1583 = vsub.s32 0, %v1582
        %v1584 = vrot.slane %v1576, %v1583
        %v1585 = vmul.f32 %v1580, %v580
        %v1586 = vmul.f32 %v1584, %v581
        %1587 = vst [vmem:[%s577] sm:$0xff] %v1585
        %1588 = vst [vmem:[%s577 + $0x8] sm:$0xff] %v1586
        %s1589 = sand.u32 %s350, 1
        %s1590 = scalar_lea.sflag [#allocation5], %s1589
        %s1591 = sand.u32 %s350, 1
        %s1592 = smul.addr %s1591, 16
        %s1593 = scalar_lea.vmem [#allocation14], %s1592
        // Predicated region
        $region101: #{tpu_custom_call.1} parent=75 // pred_check
          %p1594 = pneg %p360
        $region102: #{tpu_custom_call.1} parent=75 // pred_check_branch
          %1596 = sbr.rel (%p1594) target = $region104
        $region103: #{tpu_custom_call.1} parent=75 // pred_region
          %s1598 = ssub.s32 256, 256
          %1599 = vsyncadd %s1590, %s1598
          %s1600 = smul.addr %s38, 2
          %s1601 = smul.addr %s1600, 128
          %s1602 = scalar_lea.hbm %s14, %s1601
          %s1604 = sshll.u32 %s1593, 4
          %s1605 = int_to_ptr.vmem [resolvable:$true] %s1604
          %1607 = dma.vmem_to_hbm [thread:$0]  %s1605, 256, %s1602, %s1590
        $region104: #{tpu_custom_call.1} parent=75 // pred_fallthru
          _
      $region76: #{tpu_custom_call.1} parent=5 // pred_fallthru
        _
      %p1608 = scmp.le.s32.totalorder 2, %s33
      // Predicated region
      $region105: #{tpu_custom_call.1} parent=5 // pred_check
        %p1609 = pneg %p1608
      $region106: #{tpu_custom_call.1} parent=5 // pred_check_branch
        %1611 = sbr.rel (%p1609) target = $region108
      $region107: #{tpu_custom_call.1} parent=5 // pred_region
        %s1612 = ssub.s32 %s33, 2
        // Predicated region
        $region109: #{tpu_custom_call.1} parent=107 // pred_check
          %p1613 = pneg %p366
        $region110: #{tpu_custom_call.1} parent=107 // pred_check_branch
          %1615 = sbr.rel (%p1613) target = $region112
        $region111: #{tpu_custom_call.1} parent=107 // pred_region
          %s1616 = sand.u32 %s351, 1
          %s1617 = scalar_lea.sflag [#allocation5], %s1616
          %s1618 = sand.u32 %s351, 1
          %s1619 = smul.addr %s1618, 16
          %s1620 = scalar_lea.vmem [#allocation14], %s1619
          %1621 = dma.done %s1617, 256
        $region112: #{tpu_custom_call.1} parent=107 // pred_fallthru
          _
      $region108: #{tpu_custom_call.1} parent=5 // pred_fallthru
        _
    $region6: #{tpu_custom_call.1} parent=1 // loop_footer
      %s37 = sadd.s32 1, %s33
    $region7: #{tpu_custom_call.1} parent=1 // loop_footer_branch
      %32 = sbr.rel target = $region3
    $region8: #{tpu_custom_call.1} parent=1 // loop_exit
      _
    %1622 = vsyncpa [#allocation4], 1
    %s1623 = scalar_lea.sflag [#allocation4], 1
    %1624 = vsyncpa %s1623, 1
    %1625 = vsyncpa [#allocation7], 1
    %s1626 = scalar_lea.sflag [#allocation7], 1
    %1627 = vsyncpa %s1626, 1
    %1628 = vsyncpa [#allocation10], 1
    %1629 = vsyncpa [#allocation13], 1
    %1630 = vsyncpa [#allocation5], 1
    %s1631 = scalar_lea.sflag [#allocation5], 1
    %1632 = vsyncpa %s1631, 1

</llo_original>
